<compile_context>
chip_gen: v5e
topology: v5e:2x2
jax: 0.10.0
libtpu: 0.0.40
codegen_flags: <defaults>
</compile_context>

<pallas_src>
import jax
import jax.numpy as jnp
import numpy as np
from jax import lax
from jax.experimental import pallas as pl
from jax.experimental.pallas import tpu as pltpu

EPS = 1e-5
KS = 5        # conv kernel size
PAD = 2       # conv padding
C_OUT = 16    # output channels
K_PAD = 32    # padded contraction size (25 taps + 1 bias row + 6 zero rows)


def _lane_rotl(x, s):
    """result[..., i] = x[..., (i + s) % Q]; left rotation along the lane axis.

    Implemented as two static lane slices + concat (equivalent to pltpu.roll
    with a negative shift); lands on relayout/XLU hardware, not the vld slot.
    """
    if s == 0:
        return x
    return jnp.concatenate([x[:, s:], x[:, :s]], axis=1)


def _conv_tile(plane_refs, w_ref, Wp, Q):
    """Conv3d(1->16, k=5, pad=2) for one (batch, depth) output plane.

    plane_refs: 5 refs of block shape (1, 1, Q), padded depths d .. d+4.
    w_ref:      (80, 32) = (kw*16 + c, kd*5 + kh) weights, bias in col 25 of
                the kw=0 block.
    Returns conv (16, Q) in padded-position layout (junk at hp>=H or wp>=W).
    """
    planes = [p[0] for p in plane_refs]                       # each (1, Q)
    rows = []
    for kd in range(KS):
        for kh in range(KS):
            rows.append(_lane_rotl(planes[kd], kh * Wp))      # shift by kh rows
    rows.append(jnp.ones((1, Q), jnp.float32))                # bias row (25)
    rows.extend([jnp.zeros((1, Q), jnp.float32)] * (K_PAD - KS * KS - 1))
    patches = jnp.concatenate(rows, axis=0)                   # (32, Q)

    # Single MXU matmul: rows kw*16+c of `ball` hold the partial conv for tap kw.
    ball = jnp.dot(w_ref[...], patches, preferred_element_type=jnp.float32)

    conv = ball[0:C_OUT, :]
    for kw in range(1, KS):
        conv = conv + _lane_rotl(ball[kw * C_OUT:(kw + 1) * C_OUT, :], kw)
    return conv                                               # (16, Q)


def _make_stats_kernel(H, W):
    Hp, Wp = H + 2 * PAD, W + 2 * PAD
    Q = Hp * Wp
    inv_cnt = 1.0 / float(H * W)

    def kernel(p0, p1, p2, p3, p4, w_ref, mask_ref, sum_ref, m2_ref):
        conv = _conv_tile([p0, p1, p2, p3, p4], w_ref, Wp, Q)   # (16, Q)
        mask = mask_ref[...]                                    # (1, Q) {0,1}
        tile_sum = jnp.sum(conv * mask, axis=1, keepdims=True)  # (16, 1)
        tile_mean = tile_sum * inv_cnt
        centered = (conv - tile_mean) * mask
        tile_m2 = jnp.sum(centered * centered, axis=1, keepdims=True)
        sum_ref[0, 0] = tile_sum
        m2_ref[0, 0] = tile_m2

    return kernel


def _make_apply_kernel(H, W):
    Hp, Wp = H + 2 * PAD, W + 2 * PAD
    Q = Hp * Wp

    def kernel(p0, p1, p2, p3, p4, w_ref, scale_ref, shift_ref, out_ref):
        conv = _conv_tile([p0, p1, p2, p3, p4], w_ref, Wp, Q)   # (16, Q)
        # Residual: the single input channel broadcast over 16 channels; its
        # value at output (h, w) is the center tap of the center depth plane.
        xc = _lane_rotl(p2[0], PAD * Wp + PAD)                  # (1, Q)
        y = conv * scale_ref[...] + shift_ref[...] + xc         # (16, Q)
        out_ref[0, 0] = jnp.where(y > 0.0, y, jnp.expm1(y))     # ELU(alpha=1)

    return kernel


def input_transition(x, conv_w, conv_b, gamma, beta):
    """x: (N, 1, D, H, W) f32 -> (N, 16, D, H, W) f32."""
    N, C, D, H, W = x.shape
    assert C == 1
    Dp, Hp, Wp = D + 2 * PAD, H + 2 * PAD, W + 2 * PAD
    Q = Hp * Wp
    M = N * D * H * W

    # ---------- host-side layout prep (cheap / layout-only) ----------
    xp = jnp.pad(x[:, 0], ((0, 0), (PAD, PAD), (PAD, PAD), (PAD, PAD)))
    xplanes = xp.reshape(N * Dp, 1, Q)            # one padded depth-plane per row

    # (16,1,5,5,5) -> rows kw*16+c, cols kd*5+kh; bias folded into col 25 (kw=0).
    w = conv_w.reshape(C_OUT, KS, KS, KS)
    wmat = jnp.transpose(w, (3, 0, 1, 2)).reshape(KS * C_OUT, KS * KS)
    wmat = jnp.pad(wmat, ((0, 0), (0, K_PAD - KS * KS)))
    wmat = wmat.at[0:C_OUT, KS * KS].set(conv_b)

    # validity mask over padded positions (BN stats must ignore halo positions)
    mh = (np.arange(Hp) < H)[:, None]
    mw = (np.arange(Wp) < W)[None, :]
    mask = jnp.asarray((mh & mw).reshape(1, Q).astype(np.float32))

    # ---------- BlockSpecs ----------
    plane_specs = [
        pl.BlockSpec((1, 1, Q), lambda n, d, kd=kd: (n * Dp + d + kd, 0, 0))
        for kd in range(KS)
    ]
    w_spec = pl.BlockSpec((KS * C_OUT, K_PAD), lambda n, d: (0, 0))
    vec_spec = pl.BlockSpec((C_OUT, 1), lambda n, d: (0, 0))
    mask_spec = pl.BlockSpec((1, Q), lambda n, d: (0, 0))
    stat_spec = pl.BlockSpec((1, 1, C_OUT, 1), lambda n, d: (n, d, 0, 0))
    out_spec = pl.BlockSpec((1, 1, C_OUT, Q), lambda n, d: (n, d, 0, 0))

    cparams = pltpu.CompilerParams(
        dimension_semantics=("parallel", "parallel"),   # fully parallel grid
        vmem_limit_bytes=32 * 1024 * 1024)

    # ---------- pass 1: conv tile + per-tile BN partial statistics ----------
    tile_sum, tile_m2 = pl.pallas_call(
        _make_stats_kernel(H, W),
        grid=(N, D),
        in_specs=plane_specs + [w_spec, mask_spec],
        out_specs=(stat_spec, stat_spec),
        out_shape=(jax.ShapeDtypeStruct((N, D, C_OUT, 1), jnp.float32),
                   jax.ShapeDtypeStruct((N, D, C_OUT, 1), jnp.float32)),
        compiler_params=cparams,
    )(xplanes, xplanes, xplanes, xplanes, xplanes, wmat, mask)

    # ---------- combine per-tile stats (chunked / Chan variance) ----------
    cnt = float(H * W)
    total = tile_sum.sum(axis=(0, 1))                  # (16, 1)
    gmean = total / M
    tile_mean = tile_sum * (1.0 / cnt)
    between = (((tile_mean - gmean) ** 2) * cnt).sum(axis=(0, 1))
    var = (tile_m2.sum(axis=(0, 1)) + between) / M     # biased, as in BN training
    inv = lax.rsqrt(var + EPS)
    scale = gamma.reshape(C_OUT, 1) * inv
    shift = beta.reshape(C_OUT, 1) - gmean * scale
    # TODO(synk): running_mean/running_var buffer updates (stateful in PyTorch)
    # are not materialized here.

    # ---------- pass 2: conv tile + BN affine + residual + ELU ----------
    out_pad = pl.pallas_call(
        _make_apply_kernel(H, W),
        grid=(N, D),
        in_specs=plane_specs + [w_spec, vec_spec, vec_spec],
        out_specs=out_spec,
        out_shape=jax.ShapeDtypeStruct((N, D, C_OUT, Q), jnp.float32),
        compiler_params=cparams,
    )(xplanes, xplanes, xplanes, xplanes, xplanes, wmat, scale, shift)

    # strip halo positions and return to NCDHW (single fused XLA copy)
    out = out_pad.reshape(N, D, C_OUT, Hp, Wp)[:, :, :, :H, :W]
    return jnp.transpose(out, (0, 2, 1, 3, 4))


def reference(x, conv_w, conv_b, gamma, beta):
    conv = lax.conv_general_dilated(
        x, conv_w, window_strides=(1, 1, 1),
        padding=((PAD, PAD),) * 3,
        dimension_numbers=("NCDHW", "OIDHW", "NCDHW"))
    conv = conv + conv_b.reshape(1, C_OUT, 1, 1, 1)
    mean = conv.mean(axis=(0, 2, 3, 4), keepdims=True)
    var = ((conv - mean) ** 2).mean(axis=(0, 2, 3, 4), keepdims=True)
    bn = (conv - mean) * lax.rsqrt(var + EPS)
    bn = bn * gamma.reshape(1, C_OUT, 1, 1, 1) + beta.reshape(1, C_OUT, 1, 1, 1)
    y = bn + x  # broadcast channel 1 -> 16 (== cat of 16 copies)
    return jnp.where(y > 0, y, jnp.expm1(y))


if __name__ == "__main__":
    key = jax.random.PRNGKey(0)
    kx, kw, kb = jax.random.split(key, 3)

    # Small shapes: N=2, C=1, D=H=W=8 (Conv3d expects a single input channel)
    N, D, H, W = 2, 8, 8, 8
    x = jax.random.normal(kx, (N, 1, D, H, W), dtype=jnp.float32)

    conv_w = 0.1 * jax.random.normal(kw, (C_OUT, 1, KS, KS, KS), dtype=jnp.float32)
    conv_b = 0.1 * jax.random.normal(kb, (C_OUT,), dtype=jnp.float32)
    gamma = jnp.ones((C_OUT,), dtype=jnp.float32)   # BatchNorm3d default weight
    beta = jnp.zeros((C_OUT,), dtype=jnp.float32)   # BatchNorm3d default bias

    out = input_transition(x, conv_w, conv_b, gamma, beta)
    out = jax.block_until_ready(out)

    ref = reference(x, conv_w, conv_b, gamma, beta)
    np.testing.assert_allclose(np.asarray(out), np.asarray(ref),
                               rtol=1e-4, atol=1e-4)
    assert out.shape == (N, C_OUT, D, H, W)

    print("KERNEL_OK")
</pallas_src>

<mosaic_0001>
module attributes {stable_mosaic.version = 11 : i64} {
  func.func @kernel(%arg0: i32, %arg1: i32, %arg2: memref<1x1x144xf32, #tpu.memory_space<vmem>>, %arg3: memref<1x1x144xf32, #tpu.memory_space<vmem>>, %arg4: memref<1x1x144xf32, #tpu.memory_space<vmem>>, %arg5: memref<1x1x144xf32, #tpu.memory_space<vmem>>, %arg6: memref<1x1x144xf32, #tpu.memory_space<vmem>>, %arg7: memref<80x32xf32, #tpu.memory_space<vmem>>, %arg8: memref<1x144xf32, #tpu.memory_space<vmem>>, %arg9: memref<1x1x16x1xf32, #tpu.memory_space<vmem>>, %arg10: memref<1x1x16x1xf32, #tpu.memory_space<vmem>>) attributes {dimension_semantics = [#tpu.dimension_semantics<parallel>, #tpu.dimension_semantics<parallel>], iteration_bounds = array<i64: 2, 8>, scalar_prefetch = 0 : i64, scratch_operands = 0 : i64, tpu.core_type = #tpu.core_type<tc>, window_params = [{transform_indices = @transform_0, window_bounds = array<i64: 1, 1, 144>}, {transform_indices = @transform_1, window_bounds = array<i64: 1, 1, 144>}, {transform_indices = @transform_2, window_bounds = array<i64: 1, 1, 144>}, {transform_indices = @transform_3, window_bounds = array<i64: 1, 1, 144>}, {transform_indices = @transform_4, window_bounds = array<i64: 1, 1, 144>}, {pipeline_mode = #tpu.pipeline_mode<synchronous>, transform_indices = @transform_5, window_bounds = array<i64: 80, 32>}, {pipeline_mode = #tpu.pipeline_mode<synchronous>, transform_indices = @transform_6, window_bounds = array<i64: 1, 144>}, {transform_indices = @transform_7, window_bounds = array<i64: 1, 1, 16, 1>}, {transform_indices = @transform_8, window_bounds = array<i64: 1, 1, 16, 1>}]} {
    %c0 = arith.constant 0 : index
    %c0_0 = arith.constant 0 : index
    %c0_1 = arith.constant 0 : index
    %0 = vector.load %arg2[%c0, %c0_0, %c0_1] : memref<1x1x144xf32, #tpu.memory_space<vmem>>, vector<1x1x144xf32>
    %1 = vector.shape_cast %0 : vector<1x1x144xf32> to vector<1x144xf32>
    %c0_2 = arith.constant 0 : index
    %c0_3 = arith.constant 0 : index
    %c0_4 = arith.constant 0 : index
    %2 = vector.load %arg3[%c0_2, %c0_3, %c0_4] : memref<1x1x144xf32, #tpu.memory_space<vmem>>, vector<1x1x144xf32>
    %3 = vector.shape_cast %2 : vector<1x1x144xf32> to vector<1x144xf32>
    %c0_5 = arith.constant 0 : index
    %c0_6 = arith.constant 0 : index
    %c0_7 = arith.constant 0 : index
    %4 = vector.load %arg4[%c0_5, %c0_6, %c0_7] : memref<1x1x144xf32, #tpu.memory_space<vmem>>, vector<1x1x144xf32>
    %5 = vector.shape_cast %4 : vector<1x1x144xf32> to vector<1x144xf32>
    %c0_8 = arith.constant 0 : index
    %c0_9 = arith.constant 0 : index
    %c0_10 = arith.constant 0 : index
    %6 = vector.load %arg5[%c0_8, %c0_9, %c0_10] : memref<1x1x144xf32, #tpu.memory_space<vmem>>, vector<1x1x144xf32>
    %7 = vector.shape_cast %6 : vector<1x1x144xf32> to vector<1x144xf32>
    %c0_11 = arith.constant 0 : index
    %c0_12 = arith.constant 0 : index
    %c0_13 = arith.constant 0 : index
    %8 = vector.load %arg6[%c0_11, %c0_12, %c0_13] : memref<1x1x144xf32, #tpu.memory_space<vmem>>, vector<1x1x144xf32>
    %9 = vector.shape_cast %8 : vector<1x1x144xf32> to vector<1x144xf32>
    %10 = vector.extract_strided_slice %1 {offsets = [0, 12], sizes = [1, 132], strides = [1, 1]} : vector<1x144xf32> to vector<1x132xf32>
    %11 = vector.extract_strided_slice %1 {offsets = [0, 0], sizes = [1, 12], strides = [1, 1]} : vector<1x144xf32> to vector<1x12xf32>
    %12 = tpu.concatenate %10, %11 in 1 : vector<1x132xf32>, vector<1x12xf32> -> vector<1x144xf32>
    %13 = vector.extract_strided_slice %1 {offsets = [0, 24], sizes = [1, 120], strides = [1, 1]} : vector<1x144xf32> to vector<1x120xf32>
    %14 = vector.extract_strided_slice %1 {offsets = [0, 0], sizes = [1, 24], strides = [1, 1]} : vector<1x144xf32> to vector<1x24xf32>
    %15 = tpu.concatenate %13, %14 in 1 : vector<1x120xf32>, vector<1x24xf32> -> vector<1x144xf32>
    %16 = vector.extract_strided_slice %1 {offsets = [0, 36], sizes = [1, 108], strides = [1, 1]} : vector<1x144xf32> to vector<1x108xf32>
    %17 = vector.extract_strided_slice %1 {offsets = [0, 0], sizes = [1, 36], strides = [1, 1]} : vector<1x144xf32> to vector<1x36xf32>
    %18 = tpu.concatenate %16, %17 in 1 : vector<1x108xf32>, vector<1x36xf32> -> vector<1x144xf32>
    %19 = vector.extract_strided_slice %1 {offsets = [0, 48], sizes = [1, 96], strides = [1, 1]} : vector<1x144xf32> to vector<1x96xf32>
    %20 = vector.extract_strided_slice %1 {offsets = [0, 0], sizes = [1, 48], strides = [1, 1]} : vector<1x144xf32> to vector<1x48xf32>
    %21 = tpu.concatenate %19, %20 in 1 : vector<1x96xf32>, vector<1x48xf32> -> vector<1x144xf32>
    %22 = vector.extract_strided_slice %3 {offsets = [0, 12], sizes = [1, 132], strides = [1, 1]} : vector<1x144xf32> to vector<1x132xf32>
    %23 = vector.extract_strided_slice %3 {offsets = [0, 0], sizes = [1, 12], strides = [1, 1]} : vector<1x144xf32> to vector<1x12xf32>
    %24 = tpu.concatenate %22, %23 in 1 : vector<1x132xf32>, vector<1x12xf32> -> vector<1x144xf32>
    %25 = vector.extract_strided_slice %3 {offsets = [0, 24], sizes = [1, 120], strides = [1, 1]} : vector<1x144xf32> to vector<1x120xf32>
    %26 = vector.extract_strided_slice %3 {offsets = [0, 0], sizes = [1, 24], strides = [1, 1]} : vector<1x144xf32> to vector<1x24xf32>
    %27 = tpu.concatenate %25, %26 in 1 : vector<1x120xf32>, vector<1x24xf32> -> vector<1x144xf32>
    %28 = vector.extract_strided_slice %3 {offsets = [0, 36], sizes = [1, 108], strides = [1, 1]} : vector<1x144xf32> to vector<1x108xf32>
    %29 = vector.extract_strided_slice %3 {offsets = [0, 0], sizes = [1, 36], strides = [1, 1]} : vector<1x144xf32> to vector<1x36xf32>
    %30 = tpu.concatenate %28, %29 in 1 : vector<1x108xf32>, vector<1x36xf32> -> vector<1x144xf32>
    %31 = vector.extract_strided_slice %3 {offsets = [0, 48], sizes = [1, 96], strides = [1, 1]} : vector<1x144xf32> to vector<1x96xf32>
    %32 = vector.extract_strided_slice %3 {offsets = [0, 0], sizes = [1, 48], strides = [1, 1]} : vector<1x144xf32> to vector<1x48xf32>
    %33 = tpu.concatenate %31, %32 in 1 : vector<1x96xf32>, vector<1x48xf32> -> vector<1x144xf32>
    %34 = vector.extract_strided_slice %5 {offsets = [0, 12], sizes = [1, 132], strides = [1, 1]} : vector<1x144xf32> to vector<1x132xf32>
    %35 = vector.extract_strided_slice %5 {offsets = [0, 0], sizes = [1, 12], strides = [1, 1]} : vector<1x144xf32> to vector<1x12xf32>
    %36 = tpu.concatenate %34, %35 in 1 : vector<1x132xf32>, vector<1x12xf32> -> vector<1x144xf32>
    %37 = vector.extract_strided_slice %5 {offsets = [0, 24], sizes = [1, 120], strides = [1, 1]} : vector<1x144xf32> to vector<1x120xf32>
    %38 = vector.extract_strided_slice %5 {offsets = [0, 0], sizes = [1, 24], strides = [1, 1]} : vector<1x144xf32> to vector<1x24xf32>
    %39 = tpu.concatenate %37, %38 in 1 : vector<1x120xf32>, vector<1x24xf32> -> vector<1x144xf32>
    %40 = vector.extract_strided_slice %5 {offsets = [0, 36], sizes = [1, 108], strides = [1, 1]} : vector<1x144xf32> to vector<1x108xf32>
    %41 = vector.extract_strided_slice %5 {offsets = [0, 0], sizes = [1, 36], strides = [1, 1]} : vector<1x144xf32> to vector<1x36xf32>
    %42 = tpu.concatenate %40, %41 in 1 : vector<1x108xf32>, vector<1x36xf32> -> vector<1x144xf32>
    %43 = vector.extract_strided_slice %5 {offsets = [0, 48], sizes = [1, 96], strides = [1, 1]} : vector<1x144xf32> to vector<1x96xf32>
    %44 = vector.extract_strided_slice %5 {offsets = [0, 0], sizes = [1, 48], strides = [1, 1]} : vector<1x144xf32> to vector<1x48xf32>
    %45 = tpu.concatenate %43, %44 in 1 : vector<1x96xf32>, vector<1x48xf32> -> vector<1x144xf32>
    %46 = vector.extract_strided_slice %7 {offsets = [0, 12], sizes = [1, 132], strides = [1, 1]} : vector<1x144xf32> to vector<1x132xf32>
    %47 = vector.extract_strided_slice %7 {offsets = [0, 0], sizes = [1, 12], strides = [1, 1]} : vector<1x144xf32> to vector<1x12xf32>
    %48 = tpu.concatenate %46, %47 in 1 : vector<1x132xf32>, vector<1x12xf32> -> vector<1x144xf32>
    %49 = vector.extract_strided_slice %7 {offsets = [0, 24], sizes = [1, 120], strides = [1, 1]} : vector<1x144xf32> to vector<1x120xf32>
    %50 = vector.extract_strided_slice %7 {offsets = [0, 0], sizes = [1, 24], strides = [1, 1]} : vector<1x144xf32> to vector<1x24xf32>
    %51 = tpu.concatenate %49, %50 in 1 : vector<1x120xf32>, vector<1x24xf32> -> vector<1x144xf32>
    %52 = vector.extract_strided_slice %7 {offsets = [0, 36], sizes = [1, 108], strides = [1, 1]} : vector<1x144xf32> to vector<1x108xf32>
    %53 = vector.extract_strided_slice %7 {offsets = [0, 0], sizes = [1, 36], strides = [1, 1]} : vector<1x144xf32> to vector<1x36xf32>
    %54 = tpu.concatenate %52, %53 in 1 : vector<1x108xf32>, vector<1x36xf32> -> vector<1x144xf32>
    %55 = vector.extract_strided_slice %7 {offsets = [0, 48], sizes = [1, 96], strides = [1, 1]} : vector<1x144xf32> to vector<1x96xf32>
    %56 = vector.extract_strided_slice %7 {offsets = [0, 0], sizes = [1, 48], strides = [1, 1]} : vector<1x144xf32> to vector<1x48xf32>
    %57 = tpu.concatenate %55, %56 in 1 : vector<1x96xf32>, vector<1x48xf32> -> vector<1x144xf32>
    %58 = vector.extract_strided_slice %9 {offsets = [0, 12], sizes = [1, 132], strides = [1, 1]} : vector<1x144xf32> to vector<1x132xf32>
    %59 = vector.extract_strided_slice %9 {offsets = [0, 0], sizes = [1, 12], strides = [1, 1]} : vector<1x144xf32> to vector<1x12xf32>
    %60 = tpu.concatenate %58, %59 in 1 : vector<1x132xf32>, vector<1x12xf32> -> vector<1x144xf32>
    %61 = vector.extract_strided_slice %9 {offsets = [0, 24], sizes = [1, 120], strides = [1, 1]} : vector<1x144xf32> to vector<1x120xf32>
    %62 = vector.extract_strided_slice %9 {offsets = [0, 0], sizes = [1, 24], strides = [1, 1]} : vector<1x144xf32> to vector<1x24xf32>
    %63 = tpu.concatenate %61, %62 in 1 : vector<1x120xf32>, vector<1x24xf32> -> vector<1x144xf32>
    %64 = vector.extract_strided_slice %9 {offsets = [0, 36], sizes = [1, 108], strides = [1, 1]} : vector<1x144xf32> to vector<1x108xf32>
    %65 = vector.extract_strided_slice %9 {offsets = [0, 0], sizes = [1, 36], strides = [1, 1]} : vector<1x144xf32> to vector<1x36xf32>
    %66 = tpu.concatenate %64, %65 in 1 : vector<1x108xf32>, vector<1x36xf32> -> vector<1x144xf32>
    %67 = vector.extract_strided_slice %9 {offsets = [0, 48], sizes = [1, 96], strides = [1, 1]} : vector<1x144xf32> to vector<1x96xf32>
    %68 = vector.extract_strided_slice %9 {offsets = [0, 0], sizes = [1, 48], strides = [1, 1]} : vector<1x144xf32> to vector<1x48xf32>
    %69 = tpu.concatenate %67, %68 in 1 : vector<1x96xf32>, vector<1x48xf32> -> vector<1x144xf32>
    %cst = arith.constant 1.000000e+00 : f32
    %70 = vector.broadcast %cst : f32 to vector<1x144xf32>
    %cst_14 = arith.constant 0.000000e+00 : f32
    %71 = vector.broadcast %cst_14 : f32 to vector<1x144xf32>
    %72 = tpu.concatenate %1, %12, %15, %18, %21, %3, %24, %27, %30, %33, %5, %36, %39, %42, %45, %7 in 0 : vector<1x144xf32>, vector<1x144xf32>, vector<1x144xf32>, vector<1x144xf32>, vector<1x144xf32>, vector<1x144xf32>, vector<1x144xf32>, vector<1x144xf32>, vector<1x144xf32>, vector<1x144xf32>, vector<1x144xf32>, vector<1x144xf32>, vector<1x144xf32>, vector<1x144xf32>, vector<1x144xf32>, vector<1x144xf32> -> vector<16x144xf32>
    %73 = tpu.concatenate %48, %51, %54, %57, %9, %60, %63, %66, %69, %70, %71, %71, %71, %71, %71, %71 in 0 : vector<1x144xf32>, vector<1x144xf32>, vector<1x144xf32>, vector<1x144xf32>, vector<1x144xf32>, vector<1x144xf32>, vector<1x144xf32>, vector<1x144xf32>, vector<1x144xf32>, vector<1x144xf32>, vector<1x144xf32>, vector<1x144xf32>, vector<1x144xf32>, vector<1x144xf32>, vector<1x144xf32>, vector<1x144xf32> -> vector<16x144xf32>
    %74 = tpu.concatenate %72, %73 in 0 : vector<16x144xf32>, vector<16x144xf32> -> vector<32x144xf32>
    %c0_15 = arith.constant 0 : index
    %c0_16 = arith.constant 0 : index
    %75 = vector.load %arg7[%c0_15, %c0_16] : memref<80x32xf32, #tpu.memory_space<vmem>>, vector<80x32xf32>
    %cst_17 = arith.constant dense<0.000000e+00> : vector<80x144xf32>
    %76 = tpu.matmul %75, %74, %cst_17 {dimension_numbers = #tpu.dot_dimension_numbers<[1], [0], [0], [1], [0, 0, 1, 1], [], []>} : vector<80x32xf32>, vector<32x144xf32>, vector<80x144xf32> -> vector<80x144xf32>
    %77 = vector.extract_strided_slice %76 {offsets = [0, 0], sizes = [16, 144], strides = [1, 1]} : vector<80x144xf32> to vector<16x144xf32>
    %78 = vector.extract_strided_slice %76 {offsets = [16, 0], sizes = [16, 144], strides = [1, 1]} : vector<80x144xf32> to vector<16x144xf32>
    %79 = vector.extract_strided_slice %78 {offsets = [0, 1], sizes = [16, 143], strides = [1, 1]} : vector<16x144xf32> to vector<16x143xf32>
    %80 = vector.extract_strided_slice %78 {offsets = [0, 0], sizes = [16, 1], strides = [1, 1]} : vector<16x144xf32> to vector<16x1xf32>
    %81 = tpu.concatenate %79, %80 in 1 : vector<16x143xf32>, vector<16x1xf32> -> vector<16x144xf32>
    %82 = arith.addf %77, %81 : vector<16x144xf32>
    %83 = vector.extract_strided_slice %76 {offsets = [32, 0], sizes = [16, 144], strides = [1, 1]} : vector<80x144xf32> to vector<16x144xf32>
    %84 = vector.extract_strided_slice %83 {offsets = [0, 2], sizes = [16, 142], strides = [1, 1]} : vector<16x144xf32> to vector<16x142xf32>
    %85 = vector.extract_strided_slice %83 {offsets = [0, 0], sizes = [16, 2], strides = [1, 1]} : vector<16x144xf32> to vector<16x2xf32>
    %86 = tpu.concatenate %84, %85 in 1 : vector<16x142xf32>, vector<16x2xf32> -> vector<16x144xf32>
    %87 = arith.addf %82, %86 : vector<16x144xf32>
    %88 = vector.extract_strided_slice %76 {offsets = [48, 0], sizes = [16, 144], strides = [1, 1]} : vector<80x144xf32> to vector<16x144xf32>
    %89 = vector.extract_strided_slice %88 {offsets = [0, 3], sizes = [16, 141], strides = [1, 1]} : vector<16x144xf32> to vector<16x141xf32>
    %90 = vector.extract_strided_slice %88 {offsets = [0, 0], sizes = [16, 3], strides = [1, 1]} : vector<16x144xf32> to vector<16x3xf32>
    %91 = tpu.concatenate %89, %90 in 1 : vector<16x141xf32>, vector<16x3xf32> -> vector<16x144xf32>
    %92 = arith.addf %87, %91 : vector<16x144xf32>
    %93 = vector.extract_strided_slice %76 {offsets = [64, 0], sizes = [16, 144], strides = [1, 1]} : vector<80x144xf32> to vector<16x144xf32>
    %94 = vector.extract_strided_slice %93 {offsets = [0, 4], sizes = [16, 140], strides = [1, 1]} : vector<16x144xf32> to vector<16x140xf32>
    %95 = vector.extract_strided_slice %93 {offsets = [0, 0], sizes = [16, 4], strides = [1, 1]} : vector<16x144xf32> to vector<16x4xf32>
    %96 = tpu.concatenate %94, %95 in 1 : vector<16x140xf32>, vector<16x4xf32> -> vector<16x144xf32>
    %97 = arith.addf %92, %96 : vector<16x144xf32>
    %c0_18 = arith.constant 0 : index
    %c0_19 = arith.constant 0 : index
    %98 = vector.load %arg8[%c0_18, %c0_19] : memref<1x144xf32, #tpu.memory_space<vmem>>, vector<1x144xf32>
    %99 = vector.broadcast %98 : vector<1x144xf32> to vector<16x144xf32>
    %100 = arith.mulf %97, %99 : vector<16x144xf32>
    %cst_20 = arith.constant dense<0.000000e+00> : vector<16xf32>
    %101 = vector.multi_reduction <add>, %100, %cst_20 [1] : vector<16x144xf32> to vector<16xf32>
    %102 = vector.shape_cast %101 : vector<16xf32> to vector<16x1xf32>
    %cst_21 = arith.constant 1.562500e-02 : f32
    %103 = vector.broadcast %cst_21 : f32 to vector<16x1xf32>
    %104 = arith.mulf %102, %103 : vector<16x1xf32>
    %105 = vector.broadcast %104 : vector<16x1xf32> to vector<16x144xf32>
    %106 = arith.subf %97, %105 : vector<16x144xf32>
    %107 = vector.broadcast %98 : vector<1x144xf32> to vector<16x144xf32>
    %108 = arith.mulf %106, %107 : vector<16x144xf32>
    %109 = arith.mulf %108, %108 : vector<16x144xf32>
    %cst_22 = arith.constant dense<0.000000e+00> : vector<16xf32>
    %110 = vector.multi_reduction <add>, %109, %cst_22 [1] : vector<16x144xf32> to vector<16xf32>
    %111 = vector.shape_cast %110 : vector<16xf32> to vector<16x1xf32>
    %c0_23 = arith.constant 0 : index
    %c0_24 = arith.constant 0 : index
    %c0_25 = arith.constant 0 : index
    %c0_26 = arith.constant 0 : index
    %112 = vector.load %arg9[%c0_23, %c0_24, %c0_25, %c0_26] : memref<1x1x16x1xf32, #tpu.memory_space<vmem>>, vector<1x1x16x1xf32>
    %113 = vector.shape_cast %112 : vector<1x1x16x1xf32> to vector<16x1xf32>
    %114 = vector.shape_cast %102 : vector<16x1xf32> to vector<1x1x16x1xf32>
    tpu.vector_store %arg9[%c0_23, %c0_24, %c0_25, %c0_26], %114 {strides = array<i32>} : memref<1x1x16x1xf32, #tpu.memory_space<vmem>>, vector<1x1x16x1xf32>,
    %c0_27 = arith.constant 0 : index
    %c0_28 = arith.constant 0 : index
    %c0_29 = arith.constant 0 : index
    %c0_30 = arith.constant 0 : index
    %115 = vector.load %arg10[%c0_27, %c0_28, %c0_29, %c0_30] : memref<1x1x16x1xf32, #tpu.memory_space<vmem>>, vector<1x1x16x1xf32>
    %116 = vector.shape_cast %115 : vector<1x1x16x1xf32> to vector<16x1xf32>
    %117 = vector.shape_cast %111 : vector<16x1xf32> to vector<1x1x16x1xf32>
    tpu.vector_store %arg10[%c0_27, %c0_28, %c0_29, %c0_30], %117 {strides = array<i32>} : memref<1x1x16x1xf32, #tpu.memory_space<vmem>>, vector<1x1x16x1xf32>,
    return
  }
  func.func @transform_0(%arg0: i32, %arg1: i32) -> (i32, i32, i32) {
    %c12_i32 = arith.constant 12 : i32
    %0 = arith.muli %arg0, %c12_i32 : i32
    %1 = arith.addi %0, %arg1 : i32
    %c0_i32 = arith.constant 0 : i32
    %2 = arith.addi %1, %c0_i32 : i32
    %c0_i32_0 = arith.constant 0 : i32
    %c0_i32_1 = arith.constant 0 : i32
    %c0_i32_2 = arith.constant 0 : i32
    return %2, %c0_i32_0, %c0_i32_1 : i32, i32, i32
  }
  func.func @transform_1(%arg0: i32, %arg1: i32) -> (i32, i32, i32) {
    %c12_i32 = arith.constant 12 : i32
    %0 = arith.muli %arg0, %c12_i32 : i32
    %1 = arith.addi %0, %arg1 : i32
    %c1_i32 = arith.constant 1 : i32
    %2 = arith.addi %1, %c1_i32 : i32
    %c0_i32 = arith.constant 0 : i32
    %c0_i32_0 = arith.constant 0 : i32
    %c0_i32_1 = arith.constant 0 : i32
    return %2, %c0_i32, %c0_i32_0 : i32, i32, i32
  }
  func.func @transform_2(%arg0: i32, %arg1: i32) -> (i32, i32, i32) {
    %c12_i32 = arith.constant 12 : i32
    %0 = arith.muli %arg0, %c12_i32 : i32
    %1 = arith.addi %0, %arg1 : i32
    %c2_i32 = arith.constant 2 : i32
    %2 = arith.addi %1, %c2_i32 : i32
    %c0_i32 = arith.constant 0 : i32
    %c0_i32_0 = arith.constant 0 : i32
    %c0_i32_1 = arith.constant 0 : i32
    return %2, %c0_i32, %c0_i32_0 : i32, i32, i32
  }
  func.func @transform_3(%arg0: i32, %arg1: i32) -> (i32, i32, i32) {
    %c12_i32 = arith.constant 12 : i32
    %0 = arith.muli %arg0, %c12_i32 : i32
    %1 = arith.addi %0, %arg1 : i32
    %c3_i32 = arith.constant 3 : i32
    %2 = arith.addi %1, %c3_i32 : i32
    %c0_i32 = arith.constant 0 : i32
    %c0_i32_0 = arith.constant 0 : i32
    %c0_i32_1 = arith.constant 0 : i32
    return %2, %c0_i32, %c0_i32_0 : i32, i32, i32
  }
  func.func @transform_4(%arg0: i32, %arg1: i32) -> (i32, i32, i32) {
    %c12_i32 = arith.constant 12 : i32
    %0 = arith.muli %arg0, %c12_i32 : i32
    %1 = arith.addi %0, %arg1 : i32
    %c4_i32 = arith.constant 4 : i32
    %2 = arith.addi %1, %c4_i32 : i32
    %c0_i32 = arith.constant 0 : i32
    %c0_i32_0 = arith.constant 0 : i32
    %c0_i32_1 = arith.constant 0 : i32
    return %2, %c0_i32, %c0_i32_0 : i32, i32, i32
  }
  func.func @transform_5(%arg0: i32, %arg1: i32) -> (i32, i32) {
    %c0_i32 = arith.constant 0 : i32
    %c0_i32_0 = arith.constant 0 : i32
    %c0_i32_1 = arith.constant 0 : i32
    return %c0_i32, %c0_i32_0 : i32, i32
  }
  func.func @transform_6(%arg0: i32, %arg1: i32) -> (i32, i32) {
    %c0_i32 = arith.constant 0 : i32
    %c0_i32_0 = arith.constant 0 : i32
    %c0_i32_1 = arith.constant 0 : i32
    return %c0_i32, %c0_i32_0 : i32, i32
  }
  func.func @transform_7(%arg0: i32, %arg1: i32) -> (i32, i32, i32, i32) {
    %c0_i32 = arith.constant 0 : i32
    %c0_i32_0 = arith.constant 0 : i32
    %c0_i32_1 = arith.constant 0 : i32
    return %arg0, %arg1, %c0_i32, %c0_i32_0 : i32, i32, i32, i32
  }
  func.func @transform_8(%arg0: i32, %arg1: i32) -> (i32, i32, i32, i32) {
    %c0_i32 = arith.constant 0 : i32
    %c0_i32_0 = arith.constant 0 : i32
    %c0_i32_1 = arith.constant 0 : i32
    return %arg0, %arg1, %c0_i32, %c0_i32_0 : i32, i32, i32, i32
  }
}

</mosaic_0001>

<llo_original>
// kernel: tpu_custom_call.1
$region0: #{tpu_custom_call.1}
  #allocation0 [shape = 'u32[]', space=smem, size = 0x4, offset = 0x4, fixed_abs, tag = 'smem constant byte address 0x4 - core index']
  #allocation1 [shape = 'u32[72,128]{1,0:T(1,128)}', space=vmem, size = 0x9000, scoped, tag = 'internal scratch']
  %s0 = inlined_call_operand.vmem [shape: f32[24,1,144], index: 0, kind: input, shape index: {}]
  %s1 = inlined_call_operand.vmem [shape: f32[24,1,144], index: 1, kind: input, shape index: {}]
  %s2 = inlined_call_operand.hbm [shape: f32[24,1,144], index: 2, kind: input, shape index: {}]
  %s3 = inlined_call_operand.hbm [shape: f32[24,1,144], index: 3, kind: input, shape index: {}]
  %s4 = inlined_call_operand.hbm [shape: f32[24,1,144], index: 4, kind: input, shape index: {}]
  %s5 = inlined_call_operand.vmem [shape: f32[80,32], index: 5, kind: input, shape index: {}]
  %s6 = inlined_call_operand.vmem [shape: f32[1,144], index: 6, kind: input, shape index: {}]
  %s7 = inlined_call_operand.vmem [shape: f32[2,8,16,1], index: 7, kind: output, shape index: {0}]
  %s8 = inlined_call_operand.vmem [shape: f32[2,8,16,1], index: 8, kind: output, shape index: {1}]
  %9 = xla_tuple %s7, %s8
  %s10 = sld [smem:[#allocation0]]
  $region81: #{tpu_custom_call.1} parent=0
    _
  %s12 = ssub.s32 1, %s10
  %s13 = scalar_select 0, %s12, %s10
  $region1: #{tpu_custom_call.1} parent=0
    #allocation2 [shape = 'u8[2048]{0}', space=vmem, size = 0x800, scoped, tag = 'input window, operand 2']
    #allocation3 [shape = 's32[2]{0}', space=sflag, size = 0x8, scoped, tag = 'scoped memory for tpu_custom_call.1']
    #allocation4 [shape = 'u8[2048]{0}', space=vmem, size = 0x800, scoped, tag = 'input window, operand 3']
    #allocation5 [shape = 's32[2]{0}', space=sflag, size = 0x8, scoped, tag = 'scoped memory for tpu_custom_call.1']
    #allocation6 [shape = 'u8[2048]{0}', space=vmem, size = 0x800, scoped, tag = 'input window, operand 4']
    %14 = vsyncpa [#allocation3], 0
    %s15 = scalar_lea.sflag [#allocation3], 1
    %16 = vsyncpa %s15, 0
    %17 = vsyncpa [#allocation5], 0
    %s18 = scalar_lea.sflag [#allocation5], 1
    %19 = vsyncpa %s18, 0
    loop: start=0, step=1, limit=18
    $region2: #{tpu_custom_call.1} parent=1 // loop_pre_header
      _
    $region3: #{tpu_custom_call.1} parent=1 // loop_header
      %s21 = sphi 0, %s25
      %p22 = scmp.ge.s32.totalorder %s21, 18
      %s28 = sphi 0, %s40
      %s29 = sphi 0, %s36
      %s30 = sphi 0, %s28
      %s31 = sphi 0, %s29
      %s32 = sphi 0, %s30
      %s33 = sphi 0, %s31
      %s47 = sphi 0, %s49
      %s50 = sphi 0, %s47
      %s51 = sphi 0, %s50
      %s67 = sphi 0, %s51
      %s79 = sphi 0, %s81
      %s82 = sphi 0, %s79
      %s83 = sphi 0, %s82
      %s99 = sphi 0, %s83
      %s111 = sphi 0, %s113
      %s114 = sphi 0, %s111
      %s115 = sphi 0, %s114
      %s131 = sphi 0, %s115
      %s143 = sphi 0, %s145
      %s146 = sphi 0, %s143
      %s147 = sphi 0, %s146
      %s163 = sphi 0, %s147
      %s175 = sphi 0, %s177
      %s178 = sphi 0, %s175
      %s179 = sphi 0, %s178
      %s195 = sphi 0, %s179
      %s199 = sphi 0, %s199
      %s201 = sphi 0, %s199
      %s202 = sphi 0, %s201
      %s216 = sphi 0, %s202
      %s220 = sphi 0, %s220
      %s222 = sphi 0, %s220
      %s223 = sphi 0, %s222
      %s237 = sphi 0, %s223
      %s245 = sphi 0, %s247
      %s248 = sphi 0, %s245
      %s249 = sphi 0, %s248
      %s265 = sphi 0, %s249
      %s273 = sphi 0, %s275
      %s276 = sphi 0, %s273
      %s277 = sphi 0, %s276
      %s293 = sphi 0, %s277
    $region4: #{tpu_custom_call.1} parent=1 // loop_header_branch
      %24 = sbr.rel (%p22) target = $region8
    $region5: #{tpu_custom_call.1} parent=1 // loop_body
      %s26 = ssub.s32 %s21, 1
      %s27 = ssub.s32 %s21, 2
      %s34 = sadd.s32 1, %s29
      %p35 = scmp.ge.s32.totalorder %s34, 8
      %s36 = scalar_select %p35, 0, %s34
      %s37 = sadd.s32 1, %s28
      %s38 = scalar_select %p35, %s37, %s28
      %p39 = scmp.ge.s32.totalorder %s38, 2
      %s40 = scalar_select %p39, 0, %s38
      %s41 = smul.u32 %s28, 12
      %s42 = sadd.s32 %s41, %s29
      %s43 = smul.u32 %s40, 12
      %s44 = sadd.s32 %s43, %s36
      %s45 = ssub.s32 %s42, %s44
      %p46 = scmp.eq.s32.totalorder %s45, 0
      %s48 = sadd.s32 %s47, 1
      %s49 = scalar_select %p46, %s47, %s48
      %p52 = pneg %p46
      %p53 = scmp.eq.s32.totalorder %s21, 15
      %p54 = por %p52, %p53
      %p55 = scmp.ne.s32.totalorder %s47, %s50
      %p56 = scmp.eq.s32.totalorder %s21, 0
      %p57 = por %p55, %p56
      %p58 = scmp.ne.s32.totalorder %s47, %s50
      %p59 = scmp.eq.s32.totalorder %s26, 15
      %p60 = por %p58, %p59
      %p61 = scmp.ne.s32.totalorder %s50, %s51
      %p62 = scmp.eq.s32.totalorder %s26, 0
      %p63 = por %p61, %p62
      %p64 = scmp.ne.s32.totalorder %s50, %s51
      %p65 = scmp.eq.s32.totalorder %s27, 15
      %p66 = por %p64, %p65
      %p68 = scmp.ne.s32.totalorder %s51, %s67
      %p69 = scmp.eq.s32.totalorder %s27, 0
      %p70 = por %p68, %p69
      %s71 = smul.u32 %s28, 12
      %s72 = sadd.s32 %s71, %s29
      %s73 = sadd.s32 %s72, 1
      %s74 = smul.u32 %s40, 12
      %s75 = sadd.s32 %s74, %s36
      %s76 = sadd.s32 %s75, 1
      %s77 = ssub.s32 %s73, %s76
      %p78 = scmp.eq.s32.totalorder %s77, 0
      %s80 = sadd.s32 %s79, 1
      %s81 = scalar_select %p78, %s79, %s80
      %p84 = pneg %p78
      %p85 = scmp.eq.s32.totalorder %s21, 15
      %p86 = por %p84, %p85
      %p87 = scmp.ne.s32.totalorder %s79, %s82
      %p88 = scmp.eq.s32.totalorder %s21, 0
      %p89 = por %p87, %p88
      %p90 = scmp.ne.s32.totalorder %s79, %s82
      %p91 = scmp.eq.s32.totalorder %s26, 15
      %p92 = por %p90, %p91
      %p93 = scmp.ne.s32.totalorder %s82, %s83
      %p94 = scmp.eq.s32.totalorder %s26, 0
      %p95 = por %p93, %p94
      %p96 = scmp.ne.s32.totalorder %s82, %s83
      %p97 = scmp.eq.s32.totalorder %s27, 15
      %p98 = por %p96, %p97
      %p100 = scmp.ne.s32.totalorder %s83, %s99
      %p101 = scmp.eq.s32.totalorder %s27, 0
      %p102 = por %p100, %p101
      %s103 = smul.u32 %s28, 12
      %s104 = sadd.s32 %s103, %s29
      %s105 = sadd.s32 %s104, 2
      %s106 = smul.u32 %s40, 12
      %s107 = sadd.s32 %s106, %s36
      %s108 = sadd.s32 %s107, 2
      %s109 = ssub.s32 %s105, %s108
      %p110 = scmp.eq.s32.totalorder %s109, 0
      %s112 = sadd.s32 %s111, 1
      %s113 = scalar_select %p110, %s111, %s112
      %p116 = pneg %p110
      %p117 = scmp.eq.s32.totalorder %s21, 15
      %p118 = por %p116, %p117
      %p119 = scmp.ne.s32.totalorder %s111, %s114
      %p120 = scmp.eq.s32.totalorder %s21, 0
      %p121 = por %p119, %p120
      %p122 = scmp.ne.s32.totalorder %s111, %s114
      %p123 = scmp.eq.s32.totalorder %s26, 15
      %p124 = por %p122, %p123
      %p125 = scmp.ne.s32.totalorder %s114, %s115
      %p126 = scmp.eq.s32.totalorder %s26, 0
      %p127 = por %p125, %p126
      %p128 = scmp.ne.s32.totalorder %s114, %s115
      %p129 = scmp.eq.s32.totalorder %s27, 15
      %p130 = por %p128, %p129
      %p132 = scmp.ne.s32.totalorder %s115, %s131
      %p133 = scmp.eq.s32.totalorder %s27, 0
      %p134 = por %p132, %p133
      %s135 = smul.u32 %s28, 12
      %s136 = sadd.s32 %s135, %s29
      %s137 = sadd.s32 %s136, 3
      %s138 = smul.u32 %s40, 12
      %s139 = sadd.s32 %s138, %s36
      %s140 = sadd.s32 %s139, 3
      %s141 = ssub.s32 %s137, %s140
      %p142 = scmp.eq.s32.totalorder %s141, 0
      %s144 = sadd.s32 %s143, 1
      %s145 = scalar_select %p142, %s143, %s144
      %p148 = pneg %p142
      %p149 = scmp.eq.s32.totalorder %s21, 15
      %p150 = por %p148, %p149
      %p151 = scmp.ne.s32.totalorder %s143, %s146
      %p152 = scmp.eq.s32.totalorder %s21, 0
      %p153 = por %p151, %p152
      %p154 = scmp.ne.s32.totalorder %s143, %s146
      %p155 = scmp.eq.s32.totalorder %s26, 15
      %p156 = por %p154, %p155
      %p157 = scmp.ne.s32.totalorder %s146, %s147
      %p158 = scmp.eq.s32.totalorder %s26, 0
      %p159 = por %p157, %p158
      %p160 = scmp.ne.s32.totalorder %s146, %s147
      %p161 = scmp.eq.s32.totalorder %s27, 15
      %p162 = por %p160, %p161
      %p164 = scmp.ne.s32.totalorder %s147, %s163
      %p165 = scmp.eq.s32.totalorder %s27, 0
      %p166 = por %p164, %p165
      %s167 = smul.u32 %s28, 12
      %s168 = sadd.s32 %s167, %s29
      %s169 = sadd.s32 %s168, 4
      %s170 = smul.u32 %s40, 12
      %s171 = sadd.s32 %s170, %s36
      %s172 = sadd.s32 %s171, 4
      %s173 = ssub.s32 %s169, %s172
      %p174 = scmp.eq.s32.totalorder %s173, 0
      %s176 = sadd.s32 %s175, 1
      %s177 = scalar_select %p174, %s175, %s176
      %p180 = pneg %p174
      %p181 = scmp.eq.s32.totalorder %s21, 15
      %p182 = por %p180, %p181
      %p183 = scmp.ne.s32.totalorder %s175, %s178
      %p184 = scmp.eq.s32.totalorder %s21, 0
      %p185 = por %p183, %p184
      %p186 = scmp.ne.s32.totalorder %s175, %s178
      %p187 = scmp.eq.s32.totalorder %s26, 15
      %p188 = por %p186, %p187
      %p189 = scmp.ne.s32.totalorder %s178, %s179
      %p190 = scmp.eq.s32.totalorder %s26, 0
      %p191 = por %p189, %p190
      %p192 = scmp.ne.s32.totalorder %s178, %s179
      %p193 = scmp.eq.s32.totalorder %s27, 15
      %p194 = por %p192, %p193
      %p196 = scmp.ne.s32.totalorder %s179, %s195
      %p197 = scmp.eq.s32.totalorder %s27, 0
      %p198 = por %p196, %p197
      %s200 = sadd.s32 %s199, 1
      %p203 = scmp.eq.s32.totalorder %s21, 15
      %p204 = scmp.ne.s32.totalorder %s199, %s201
      %p205 = scmp.eq.s32.totalorder %s21, 0
      %p206 = por %p204, %p205
      %p207 = scmp.ne.s32.totalorder %s199, %s201
      %p208 = scmp.eq.s32.totalorder %s26, 15
      %p209 = por %p207, %p208
      %p210 = scmp.ne.s32.totalorder %s201, %s202
      %p211 = scmp.eq.s32.totalorder %s26, 0
      %p212 = por %p210, %p211
      %p213 = scmp.ne.s32.totalorder %s201, %s202
      %p214 = scmp.eq.s32.totalorder %s27, 15
      %p215 = por %p213, %p214
      %p217 = scmp.ne.s32.totalorder %s202, %s216
      %p218 = scmp.eq.s32.totalorder %s27, 0
      %p219 = por %p217, %p218
      %s221 = sadd.s32 %s220, 1
      %p224 = scmp.eq.s32.totalorder %s21, 15
      %p225 = scmp.ne.s32.totalorder %s220, %s222
      %p226 = scmp.eq.s32.totalorder %s21, 0
      %p227 = por %p225, %p226
      %p228 = scmp.ne.s32.totalorder %s220, %s222
      %p229 = scmp.eq.s32.totalorder %s26, 15
      %p230 = por %p228, %p229
      %p231 = scmp.ne.s32.totalorder %s222, %s223
      %p232 = scmp.eq.s32.totalorder %s26, 0
      %p233 = por %p231, %p232
      %p234 = scmp.ne.s32.totalorder %s222, %s223
      %p235 = scmp.eq.s32.totalorder %s27, 15
      %p236 = por %p234, %p235
      %p238 = scmp.ne.s32.totalorder %s223, %s237
      %p239 = scmp.eq.s32.totalorder %s27, 0
      %p240 = por %p238, %p239
      %s241 = ssub.s32 %s28, %s40
      %s242 = ssub.s32 %s29, %s36
      %s243 = sor.u32 %s241, %s242
      %p244 = scmp.eq.s32.totalorder %s243, 0
      %s246 = sadd.s32 %s245, 1
      %s247 = scalar_select %p244, %s245, %s246
      %p250 = pneg %p244
      %p251 = scmp.eq.s32.totalorder %s21, 15
      %p252 = por %p250, %p251
      %p253 = scmp.ne.s32.totalorder %s245, %s248
      %p254 = scmp.eq.s32.totalorder %s21, 0
      %p255 = por %p253, %p254
      %p256 = scmp.ne.s32.totalorder %s245, %s248
      %p257 = scmp.eq.s32.totalorder %s26, 15
      %p258 = por %p256, %p257
      %p259 = scmp.ne.s32.totalorder %s248, %s249
      %p260 = scmp.eq.s32.totalorder %s26, 0
      %p261 = por %p259, %p260
      %p262 = scmp.ne.s32.totalorder %s248, %s249
      %p263 = scmp.eq.s32.totalorder %s27, 15
      %p264 = por %p262, %p263
      %p266 = scmp.ne.s32.totalorder %s249, %s265
      %p267 = scmp.eq.s32.totalorder %s27, 0
      %p268 = por %p266, %p267
      %s269 = ssub.s32 %s28, %s40
      %s270 = ssub.s32 %s29, %s36
      %s271 = sor.u32 %s269, %s270
      %p272 = scmp.eq.s32.totalorder %s271, 0
      %s274 = sadd.s32 %s273, 1
      %s275 = scalar_select %p272, %s273, %s274
      %p278 = pneg %p272
      %p279 = scmp.eq.s32.totalorder %s21, 15
      %p280 = por %p278, %p279
      %p281 = scmp.ne.s32.totalorder %s273, %s276
      %p282 = scmp.eq.s32.totalorder %s21, 0
      %p283 = por %p281, %p282
      %p284 = scmp.ne.s32.totalorder %s273, %s276
      %p285 = scmp.eq.s32.totalorder %s26, 15
      %p286 = por %p284, %p285
      %p287 = scmp.ne.s32.totalorder %s276, %s277
      %p288 = scmp.eq.s32.totalorder %s26, 0
      %p289 = por %p287, %p288
      %p290 = scmp.ne.s32.totalorder %s276, %s277
      %p291 = scmp.eq.s32.totalorder %s27, 15
      %p292 = por %p290, %p291
      %p294 = scmp.ne.s32.totalorder %s277, %s293
      %p295 = scmp.eq.s32.totalorder %s27, 0
      %p296 = por %p294, %p295
      %p297 = scmp.le.s32.totalorder 1, %s21
      %p298 = scmp.lt.s32.totalorder %s21, 17
      %p299 = pnand %p297, %p298
      %p300 = pneg %p299
      // Predicated region
      $region9: #{tpu_custom_call.1} parent=5 // pred_check
        _
      $region10: #{tpu_custom_call.1} parent=5 // pred_check_branch
        %302 = sbr.rel (%p299) target = $region12
      $region11: #{tpu_custom_call.1} parent=5 // pred_region
        %s303 = ssub.s32 %s21, 1
        // Predicated region
        $region13: #{tpu_custom_call.1} parent=11 // pred_check
          %p304 = pneg %p212
        $region14: #{tpu_custom_call.1} parent=11 // pred_check_branch
          %306 = sbr.rel (%p304) target = $region16
        $region15: #{tpu_custom_call.1} parent=11 // pred_region
          _
        $region16: #{tpu_custom_call.1} parent=11 // pred_fallthru
          _
        // Predicated region
        $region17: #{tpu_custom_call.1} parent=11 // pred_check
          %p307 = pneg %p233
        $region18: #{tpu_custom_call.1} parent=11 // pred_check_branch
          %309 = sbr.rel (%p307) target = $region20
        $region19: #{tpu_custom_call.1} parent=11 // pred_region
          _
        $region20: #{tpu_custom_call.1} parent=11 // pred_fallthru
          _
      $region12: #{tpu_custom_call.1} parent=5 // pred_fallthru
        _
      %p310 = scmp.lt.s32.totalorder %s21, 16
      // Predicated region
      $region21: #{tpu_custom_call.1} parent=5 // pred_check
        %p311 = pneg %p310
      $region22: #{tpu_custom_call.1} parent=5 // pred_check_branch
        %313 = sbr.rel (%p311) target = $region24
      $region23: #{tpu_custom_call.1} parent=5 // pred_region
        // Predicated region
        $region25: #{tpu_custom_call.1} parent=23 // pred_check
          %p314 = pneg %p57
        $region26: #{tpu_custom_call.1} parent=23 // pred_check_branch
          %316 = sbr.rel (%p314) target = $region28
        $region27: #{tpu_custom_call.1} parent=23 // pred_region
          %s317 = smul.u32 %s28, 12
          %s318 = sadd.s32 %s317, %s29
          %p319 = scmp.lt.s32.totalorder %s318, 23
          %s320 = scalar_select %p319, %s318, 23
          %s321 = smul.addr %s320, 2
          %s322 = scalar_lea.vmem %s0, %s321
          %s323 = smul.u32 %s28, 12
          %s324 = sadd.s32 %s323, %s29
        $region28: #{tpu_custom_call.1} parent=23 // pred_fallthru
          _
        // Predicated region
        $region29: #{tpu_custom_call.1} parent=23 // pred_check
          %p325 = pneg %p89
        $region30: #{tpu_custom_call.1} parent=23 // pred_check_branch
          %327 = sbr.rel (%p325) target = $region32
        $region31: #{tpu_custom_call.1} parent=23 // pred_region
          %s328 = smul.u32 %s28, 12
          %s329 = sadd.s32 %s328, %s29
          %s330 = sadd.s32 %s329, 1
          %p331 = scmp.lt.s32.totalorder %s330, 23
          %s332 = scalar_select %p331, %s330, 23
          %s333 = smul.addr %s332, 2
          %s334 = scalar_lea.vmem %s1, %s333
          %s335 = smul.u32 %s28, 12
          %s336 = sadd.s32 %s335, %s29
          %s337 = sadd.s32 %s336, 1
        $region32: #{tpu_custom_call.1} parent=23 // pred_fallthru
          _
        // Predicated region
        $region33: #{tpu_custom_call.1} parent=23 // pred_check
          %p338 = pneg %p121
        $region34: #{tpu_custom_call.1} parent=23 // pred_check_branch
          %340 = sbr.rel (%p338) target = $region36
        $region35: #{tpu_custom_call.1} parent=23 // pred_region
          %s341 = sand.u32 %s111, 1
          %s342 = scalar_lea.sflag [#allocation3], %s341
          %s343 = sand.u32 %s111, 1
          %s344 = smul.addr %s343, 2
          %s345 = scalar_lea.vmem [#allocation2], %s344
          %s346 = smul.u32 %s28, 12
          %s347 = sadd.s32 %s346, %s29
          %s348 = sadd.s32 %s347, 2
          %350 = vsyncadd %s342, 0
          %s351 = smul.addr %s348, 2
          %s352 = scalar_lea.hbm %s2, %s351
          %s354 = sshll.u32 %s352, 4
          %s355 = int_to_ptr.hbm [resolvable:$true] %s354
          %s356 = sshll.u32 %s345, 4
          %s357 = int_to_ptr.vmem [resolvable:$true] %s356
          %359 = dma.hbm_to_vmem [thread:$0]  %s355, 32, %s357, %s342
        $region36: #{tpu_custom_call.1} parent=23 // pred_fallthru
          _
        // Predicated region
        $region37: #{tpu_custom_call.1} parent=23 // pred_check
          %p360 = pneg %p153
        $region38: #{tpu_custom_call.1} parent=23 // pred_check_branch
          %362 = sbr.rel (%p360) target = $region40
        $region39: #{tpu_custom_call.1} parent=23 // pred_region
          %s363 = sand.u32 %s21, 1
          %s364 = scalar_lea.sflag [#allocation5], %s363
          %s365 = sand.u32 %s143, 1
          %s366 = smul.addr %s365, 2
          %s367 = scalar_lea.vmem [#allocation4], %s366
          %s368 = smul.u32 %s28, 12
          %s369 = sadd.s32 %s368, %s29
          %s370 = sadd.s32 %s369, 3
          %372 = vsyncadd %s364, 0
          %s373 = smul.addr %s370, 2
          %s374 = scalar_lea.hbm %s3, %s373
          %s376 = sshll.u32 %s374, 4
          %s377 = int_to_ptr.hbm [resolvable:$true] %s376
          %s378 = sshll.u32 %s367, 4
          %s379 = int_to_ptr.vmem [resolvable:$true] %s378
          %381 = dma.hbm_to_vmem [thread:$0]  %s377, 32, %s379, %s364
        $region40: #{tpu_custom_call.1} parent=23 // pred_fallthru
          _
        // Predicated region
        $region41: #{tpu_custom_call.1} parent=23 // pred_check
          %p382 = pneg %p185
        $region42: #{tpu_custom_call.1} parent=23 // pred_check_branch
          %384 = sbr.rel (%p382) target = $region44
        $region43: #{tpu_custom_call.1} parent=23 // pred_region
          %s385 = sand.u32 %s21, 1
          %s386 = scalar_lea.sflag [#allocation5], %s385
          %s387 = sand.u32 %s175, 1
          %s388 = smul.addr %s387, 2
          %s389 = scalar_lea.vmem [#allocation6], %s388
          %s390 = smul.u32 %s28, 12
          %s391 = sadd.s32 %s390, %s29
          %s392 = sadd.s32 %s391, 4
          %394 = vsyncadd %s386, 0
          %s395 = smul.addr %s392, 2
          %s396 = scalar_lea.hbm %s4, %s395
          %s398 = sshll.u32 %s396, 4
          %s399 = int_to_ptr.hbm [resolvable:$true] %s398
          %s400 = sshll.u32 %s389, 4
          %s401 = int_to_ptr.vmem [resolvable:$true] %s400
          %403 = dma.hbm_to_vmem [thread:$0]  %s399, 32, %s401, %s386
        $region44: #{tpu_custom_call.1} parent=23 // pred_fallthru
          _
      $region24: #{tpu_custom_call.1} parent=5 // pred_fallthru
        _
      %p404 = scmp.le.s32.totalorder 1, %s21
      %p405 = scmp.lt.s32.totalorder %s21, 17
      %p406 = pnand %p404, %p405
      %p407 = pneg %p406
      // Predicated region
      $region45: #{tpu_custom_call.1} parent=5 // pred_check
        _
      $region46: #{tpu_custom_call.1} parent=5 // pred_check_branch
        %409 = sbr.rel (%p406) target = $region48
      $region47: #{tpu_custom_call.1} parent=5 // pred_region
        %s410 = ssub.s32 %s21, 1
        %s411 = sand.u32 %s114, 1
        %s412 = scalar_lea.sflag [#allocation3], %s411
        %s413 = sand.u32 %s114, 1
        %s414 = smul.addr %s413, 2
        %s415 = scalar_lea.vmem [#allocation2], %s414
        // Predicated region
        $region49: #{tpu_custom_call.1} parent=47 // pred_check
          %p416 = pneg %p127
        $region50: #{tpu_custom_call.1} parent=47 // pred_check_branch
          %418 = sbr.rel (%p416) target = $region52
        $region51: #{tpu_custom_call.1} parent=47 // pred_region
          %420 = dma.done %s412, 32
        $region52: #{tpu_custom_call.1} parent=47 // pred_fallthru
          _
        %s421 = sand.u32 %s26, 1
        %s422 = scalar_lea.sflag [#allocation5], %s421
        %s423 = sand.u32 %s146, 1
        %s424 = smul.addr %s423, 2
        %s425 = scalar_lea.vmem [#allocation4], %s424
        // Predicated region
        $region53: #{tpu_custom_call.1} parent=47 // pred_check
          %p426 = pneg %p159
        $region54: #{tpu_custom_call.1} parent=47 // pred_check_branch
          %428 = sbr.rel (%p426) target = $region56
        $region55: #{tpu_custom_call.1} parent=47 // pred_region
          %430 = dma.done %s422, 32
        $region56: #{tpu_custom_call.1} parent=47 // pred_fallthru
          _
        %s431 = sand.u32 %s26, 1
        %s432 = scalar_lea.sflag [#allocation5], %s431
        %s433 = sand.u32 %s178, 1
        %s434 = smul.addr %s433, 2
        %s435 = scalar_lea.vmem [#allocation6], %s434
        // Predicated region
        $region57: #{tpu_custom_call.1} parent=47 // pred_check
          %p436 = pneg %p191
        $region58: #{tpu_custom_call.1} parent=47 // pred_check_branch
          %438 = sbr.rel (%p436) target = $region60
        $region59: #{tpu_custom_call.1} parent=47 // pred_region
          %440 = dma.done %s432, 32
        $region60: #{tpu_custom_call.1} parent=47 // pred_fallthru
          _
        %s441 = smul.u32 %s30, 12
        %s442 = sadd.s32 %s441, %s31
        %p443 = scmp.lt.s32.totalorder %s442, 23
        %s444 = scalar_select %p443, %s442, 23
        %s445 = smul.addr %s444, 2
        %s446 = scalar_lea.vmem %s0, %s445
        %p447 = pneg %p63
        %p448 = pneg %p60
        %s449 = smul.u32 %s30, 12
        %s450 = sadd.s32 %s449, %s31
        %s451 = sadd.s32 %s450, 1
        %p452 = scmp.lt.s32.totalorder %s451, 23
        %s453 = scalar_select %p452, %s451, 23
        %s454 = smul.addr %s453, 2
        %s455 = scalar_lea.vmem %s1, %s454
        %p456 = pneg %p95
        %p457 = pneg %p92
        %s458 = sand.u32 %s114, 1
        %s459 = scalar_lea.sflag [#allocation3], %s458
        %s460 = sand.u32 %s114, 1
        %s461 = smul.addr %s460, 2
        %s462 = scalar_lea.vmem [#allocation2], %s461
        %p463 = pneg %p127
        %p464 = pneg %p124
        %s465 = sand.u32 %s26, 1
        %s466 = scalar_lea.sflag [#allocation5], %s465
        %s467 = sand.u32 %s146, 1
        %s468 = smul.addr %s467, 2
        %s469 = scalar_lea.vmem [#allocation4], %s468
        %p470 = pneg %p159
        %p471 = pneg %p156
        %s472 = sand.u32 %s26, 1
        %s473 = scalar_lea.sflag [#allocation5], %s472
        %s474 = sand.u32 %s178, 1
        %s475 = smul.addr %s474, 2
        %s476 = scalar_lea.vmem [#allocation6], %s475
        %p477 = pneg %p191
        %p478 = pneg %p188
        %p479 = pneg %p212
        %p480 = pneg %p209
        %p481 = pneg %p233
        %p482 = pneg %p230
        %p483 = pneg %p261
        %p484 = pneg %p258
        %p485 = scmp.lt.s32.totalorder %s30, 1
        %s486 = scalar_select %p485, %s30, 1
        %p487 = scmp.lt.s32.totalorder %s31, 7
        %s488 = scalar_select %p487, %s31, 7
        %s489 = smul.addr %s488, 2
        %s490 = smul.addr %s486, 16
        %s491 = sadd.s32 %s489, %s490
        %s492 = smul.addr %s491, 8
        %s493 = scalar_lea.vmem %s7, %s492
        %p494 = pneg %p289
        %p495 = pneg %p286
        %p496 = scmp.lt.s32.totalorder %s30, 1
        %s497 = scalar_select %p496, %s30, 1
        %p498 = scmp.lt.s32.totalorder %s31, 7
        %s499 = scalar_select %p498, %s31, 7
        %s500 = smul.addr %s499, 2
        %s501 = smul.addr %s497, 16
        %s502 = sadd.s32 %s500, %s501
        %s503 = smul.addr %s502, 8
        %s504 = scalar_lea.vmem %s8, %s503
        %s505 = smul.u32 %s30, 12
        %s506 = sadd.s32 %s505, %s31
        %p507 = scmp.lt.s32.totalorder %s506, 23
        %s508 = scalar_select %p507, %s506, 23
        %s509 = smul.addr %s508, 2
        %s510 = scalar_lea.vmem %s0, %s509
        %s511 = smul.u32 %s30, 12
        %s512 = sadd.s32 %s511, %s31
        %s513 = smul.u32 %s30, 12
        %s514 = sadd.s32 %s513, %s31
        %s515 = sadd.s32 %s514, 1
        %p516 = scmp.lt.s32.totalorder %s515, 23
        %s517 = scalar_select %p516, %s515, 23
        %s518 = smul.addr %s517, 2
        %s519 = scalar_lea.vmem %s1, %s518
        %s520 = smul.u32 %s30, 12
        %s521 = sadd.s32 %s520, %s31
        %s522 = sadd.s32 %s521, 1
        %s523 = smul.u32 %s30, 12
        %s524 = sadd.s32 %s523, %s31
        %s525 = sadd.s32 %s524, 2
        %s526 = smul.u32 %s30, 12
        %s527 = sadd.s32 %s526, %s31
        %s528 = sadd.s32 %s527, 3
        %s529 = smul.u32 %s30, 12
        %s530 = sadd.s32 %s529, %s31
        %s531 = sadd.s32 %s530, 4
        %p532 = scmp.lt.s32.totalorder %s30, 1
        %s533 = scalar_select %p532, %s30, 1
        %p534 = scmp.lt.s32.totalorder %s31, 7
        %s535 = scalar_select %p534, %s31, 7
        %s536 = smul.addr %s535, 2
        %s537 = smul.addr %s533, 16
        %s538 = sadd.s32 %s536, %s537
        %s539 = smul.addr %s538, 8
        %s540 = scalar_lea.vmem %s7, %s539
        %p541 = scmp.lt.s32.totalorder %s30, 1
        %s542 = scalar_select %p541, %s30, 1
        %p543 = scmp.lt.s32.totalorder %s31, 7
        %s544 = scalar_select %p543, %s31, 7
        %s545 = smul.addr %s544, 2
        %s546 = smul.addr %s542, 16
        %s547 = sadd.s32 %s545, %s546
        %s548 = smul.addr %s547, 8
        %s549 = scalar_lea.vmem %s8, %s548
        %v550 = vld [vmem:[%s510] sm:$0x3]
        %v551 = vld [vmem:[%s519] sm:$0x3]
        %v552 = vld [vmem:[%s415] sm:$0x3]
        %v553 = vld [vmem:[%s425] sm:$0x3]
        %v554 = vld [vmem:[%s435] sm:$0x3]
        %v556 = vperm.slane %v550, 0
        %v557 = vperm.slane %v550, 1
        %558 = vrot.lane.b32.xlu0 %v556, 116
        %v559 = vpop.permute.xlu0 %558
        %560 = vrot.lane.b32.xlu0 %v557, 116
        %v561 = vpop.permute.xlu0 %560
        %vm562 = vcmask 949248
        %v563 = vsel %vm562, %v559, %v561
        %565 = vrot.lane.b32.xlu0 %v556, 4
        %v566 = vpop.permute.xlu0 %565
        %vm568 = vcmask 31744
        %v569 = vsel %vm568, %v561, %v566
        %570 = vrot.lane.b32.xlu0 %v556, 104
        %v571 = vpop.permute.xlu0 %570
        %572 = vrot.lane.b32.xlu0 %v557, 104
        %v573 = vpop.permute.xlu0 %572
        %vm574 = vcmask 850944
        %v575 = vsel %vm574, %v571, %v573
        %577 = vrot.lane.b32.xlu0 %v556, 120
        %v578 = vpop.permute.xlu0 %577
        %vm580 = vcmask 982016
        %v581 = vsel %vm580, %v575, %v578
        %582 = vrot.lane.b32.xlu0 %v556, 92
        %v583 = vpop.permute.xlu0 %582
        %584 = vrot.lane.b32.xlu0 %v557, 92
        %v585 = vpop.permute.xlu0 %584
        %vm586 = vcmask 752640
        %v587 = vsel %vm586, %v583, %v585
        %589 = vrot.lane.b32.xlu0 %v556, 108
        %v590 = vpop.permute.xlu0 %589
        %vm592 = vcmask 883712
        %v593 = vsel %vm592, %v587, %v590
        %594 = vrot.lane.b32.xlu0 %v556, 80
        %v595 = vpop.permute.xlu0 %594
        %596 = vrot.lane.b32.xlu0 %v557, 80
        %v597 = vpop.permute.xlu0 %596
        %vm598 = vcmask 654336
        %v599 = vsel %vm598, %v595, %v597
        %601 = vrot.lane.b32.xlu0 %v556, 96
        %v602 = vpop.permute.xlu0 %601
        %vm604 = vcmask 785408
        %v605 = vsel %vm604, %v599, %v602
        %v607 = vperm.slane %v551, 0
        %v608 = vperm.slane %v551, 1
        %609 = vrot.lane.b32.xlu0 %v607, 116
        %v610 = vpop.permute.xlu0 %609
        %611 = vrot.lane.b32.xlu0 %v608, 116
        %v612 = vpop.permute.xlu0 %611
        %v613 = vsel %vm562, %v610, %v612
        %615 = vrot.lane.b32.xlu0 %v607, 4
        %v616 = vpop.permute.xlu0 %615
        %v618 = vsel %vm568, %v612, %v616
        %619 = vrot.lane.b32.xlu0 %v607, 104
        %v620 = vpop.permute.xlu0 %619
        %621 = vrot.lane.b32.xlu0 %v608, 104
        %v622 = vpop.permute.xlu0 %621
        %v623 = vsel %vm574, %v620, %v622
        %625 = vrot.lane.b32.xlu0 %v607, 120
        %v626 = vpop.permute.xlu0 %625
        %v628 = vsel %vm580, %v623, %v626
        %629 = vrot.lane.b32.xlu0 %v607, 92
        %v630 = vpop.permute.xlu0 %629
        %631 = vrot.lane.b32.xlu0 %v608, 92
        %v632 = vpop.permute.xlu0 %631
        %v633 = vsel %vm586, %v630, %v632
        %635 = vrot.lane.b32.xlu0 %v607, 108
        %v636 = vpop.permute.xlu0 %635
        %v638 = vsel %vm592, %v633, %v636
        %639 = vrot.lane.b32.xlu0 %v607, 80
        %v640 = vpop.permute.xlu0 %639
        %641 = vrot.lane.b32.xlu0 %v608, 80
        %v642 = vpop.permute.xlu0 %641
        %v643 = vsel %vm598, %v640, %v642
        %645 = vrot.lane.b32.xlu0 %v607, 96
        %v646 = vpop.permute.xlu0 %645
        %v648 = vsel %vm604, %v643, %v646
        %v650 = vperm.slane %v552, 0
        %v651 = vperm.slane %v552, 1
        %652 = vrot.lane.b32.xlu0 %v650, 116
        %v653 = vpop.permute.xlu0 %652
        %654 = vrot.lane.b32.xlu0 %v651, 116
        %v655 = vpop.permute.xlu0 %654
        %v656 = vsel %vm562, %v653, %v655
        %658 = vrot.lane.b32.xlu0 %v650, 4
        %v659 = vpop.permute.xlu0 %658
        %v661 = vsel %vm568, %v655, %v659
        %662 = vrot.lane.b32.xlu0 %v650, 104
        %v663 = vpop.permute.xlu0 %662
        %664 = vrot.lane.b32.xlu0 %v651, 104
        %v665 = vpop.permute.xlu0 %664
        %v666 = vsel %vm574, %v663, %v665
        %668 = vrot.lane.b32.xlu0 %v650, 120
        %v669 = vpop.permute.xlu0 %668
        %v671 = vsel %vm580, %v666, %v669
        %672 = vrot.lane.b32.xlu0 %v650, 92
        %v673 = vpop.permute.xlu0 %672
        %674 = vrot.lane.b32.xlu0 %v651, 92
        %v675 = vpop.permute.xlu0 %674
        %v676 = vsel %vm586, %v673, %v675
        %678 = vrot.lane.b32.xlu0 %v650, 108
        %v679 = vpop.permute.xlu0 %678
        %v681 = vsel %vm592, %v676, %v679
        %682 = vrot.lane.b32.xlu0 %v650, 80
        %v683 = vpop.permute.xlu0 %682
        %684 = vrot.lane.b32.xlu0 %v651, 80
        %v685 = vpop.permute.xlu0 %684
        %v686 = vsel %vm598, %v683, %v685
        %688 = vrot.lane.b32.xlu0 %v650, 96
        %v689 = vpop.permute.xlu0 %688
        %v691 = vsel %vm604, %v686, %v689
        %v693 = vperm.slane %v553, 0
        %v694 = vperm.slane %v553, 1
        %695 = vrot.lane.b32.xlu0 %v693, 116
        %v696 = vpop.permute.xlu0 %695
        %697 = vrot.lane.b32.xlu0 %v694, 116
        %v698 = vpop.permute.xlu0 %697
        %v699 = vsel %vm562, %v696, %v698
        %702 = vrot.lane.b32.xlu0 %v693, 4
        %v703 = vpop.permute.xlu0 %702
        %v705 = vsel %vm568, %v698, %v703
        %706 = vrot.lane.b32.xlu0 %v693, 104
        %v707 = vpop.permute.xlu0 %706
        %708 = vrot.lane.b32.xlu0 %v694, 104
        %v709 = vpop.permute.xlu0 %708
        %v710 = vsel %vm574, %v707, %v709
        %712 = vrot.lane.b32.xlu0 %v693, 120
        %v713 = vpop.permute.xlu0 %712
        %v715 = vsel %vm580, %v710, %v713
        %716 = vrot.lane.b32.xlu0 %v693, 92
        %v717 = vpop.permute.xlu0 %716
        %718 = vrot.lane.b32.xlu0 %v694, 92
        %v719 = vpop.permute.xlu0 %718
        %v720 = vsel %vm586, %v717, %v719
        %722 = vrot.lane.b32.xlu0 %v693, 108
        %v723 = vpop.permute.xlu0 %722
        %v725 = vsel %vm592, %v720, %v723
        %726 = vrot.lane.b32.xlu0 %v693, 80
        %v727 = vpop.permute.xlu0 %726
        %728 = vrot.lane.b32.xlu0 %v694, 80
        %v729 = vpop.permute.xlu0 %728
        %v730 = vsel %vm598, %v727, %v729
        %732 = vrot.lane.b32.xlu0 %v693, 96
        %v733 = vpop.permute.xlu0 %732
        %v735 = vsel %vm604, %v730, %v733
        %v737 = vperm.slane %v554, 0
        %v738 = vperm.slane %v554, 1
        %739 = vrot.lane.b32.xlu0 %v737, 116
        %v740 = vpop.permute.xlu0 %739
        %741 = vrot.lane.b32.xlu0 %v738, 116
        %v742 = vpop.permute.xlu0 %741
        %v743 = vsel %vm562, %v740, %v742
        %745 = vrot.lane.b32.xlu0 %v737, 4
        %v746 = vpop.permute.xlu0 %745
        %v748 = vsel %vm568, %v742, %v746
        %749 = vrot.lane.b32.xlu0 %v737, 104
        %v750 = vpop.permute.xlu0 %749
        %751 = vrot.lane.b32.xlu0 %v738, 104
        %v752 = vpop.permute.xlu0 %751
        %v753 = vsel %vm574, %v750, %v752
        %755 = vrot.lane.b32.xlu0 %v737, 120
        %v756 = vpop.permute.xlu0 %755
        %v758 = vsel %vm580, %v753, %v756
        %759 = vrot.lane.b32.xlu0 %v737, 92
        %v760 = vpop.permute.xlu0 %759
        %761 = vrot.lane.b32.xlu0 %v738, 92
        %v762 = vpop.permute.xlu0 %761
        %v763 = vsel %vm586, %v760, %v762
        %765 = vrot.lane.b32.xlu0 %v737, 108
        %v766 = vpop.permute.xlu0 %765
        %v768 = vsel %vm592, %v763, %v766
        %769 = vrot.lane.b32.xlu0 %v737, 80
        %v770 = vpop.permute.xlu0 %769
        %771 = vrot.lane.b32.xlu0 %v738, 80
        %v772 = vpop.permute.xlu0 %771
        %v773 = vsel %vm598, %v770, %v772
        %775 = vrot.lane.b32.xlu0 %v737, 96
        %v776 = vpop.permute.xlu0 %775
        %v778 = vsel %vm604, %v773, %v776
        %v782 = vrot.slane %v563, 7
        %v783 = vrot.slane %v569, 7
        %v787 = vrot.slane %v581, 6
        %v788 = vrot.slane %v578, 6
        %v792 = vrot.slane %v593, 5
        %v793 = vrot.slane %v590, 5
        %v797 = vrot.slane %v605, 4
        %v798 = vrot.slane %v602, 4
        %v804 = vrot.slane %v613, 2
        %v805 = vrot.slane %v618, 2
        %v809 = vrot.slane %v628, 1
        %v810 = vrot.slane %v626, 1
        %v814 = vrot.slane %v648, 7
        %v815 = vrot.slane %v646, 7
        %v821 = vrot.slane %v656, 5
        %v822 = vrot.slane %v661, 5
        %v826 = vrot.slane %v671, 4
        %v827 = vrot.slane %v669, 4
        %v831 = vrot.slane %v681, 3
        %v832 = vrot.slane %v679, 3
        %v836 = vrot.slane %v691, 2
        %v837 = vrot.slane %v689, 2
        %vm842 = vcmask 1040384
        %v843 = vsel %vm842, %v556, %v782
        %v844 = vsel %vm842, %v557, %v783
        %vm845 = vcmask 1041408
        %v846 = vsel %vm845, %v843, %v787
        %v847 = vsel %vm845, %v844, %v788
        %vm848 = vcmask 1042432
        %v849 = vsel %vm848, %v846, %v792
        %v850 = vsel %vm848, %v847, %v793
        %vm851 = vcmask 1043456
        %v852 = vsel %vm851, %v849, %v797
        %v853 = vsel %vm851, %v850, %v798
        %vm854 = vcmask 1044480
        %v855 = vsel %vm854, %v852, %v607
        %v856 = vsel %vm854, %v853, %v608
        %vm857 = vcmask 1045504
        %v858 = vsel %vm857, %v855, %v804
        %v859 = vsel %vm857, %v856, %v805
        %vm860 = vcmask 1046528
        %v861 = vsel %vm860, %v858, %v809
        %v862 = vsel %vm860, %v859, %v810
        %v863 = vsel %vm842, %v638, %v814
        %v864 = vsel %vm842, %v636, %v815
        %v865 = vsel %vm845, %v863, %v650
        %v866 = vsel %vm845, %v864, %v651
        %v867 = vsel %vm848, %v865, %v821
        %v868 = vsel %vm848, %v866, %v822
        %v869 = vsel %vm851, %v867, %v826
        %v870 = vsel %vm851, %v868, %v827
        %v871 = vsel %vm854, %v869, %v831
        %v872 = vsel %vm854, %v870, %v832
        %v873 = vsel %vm857, %v871, %v836
        %v874 = vsel %vm857, %v872, %v837
        %v875 = vsel %vm860, %v873, %v693
        %v876 = vsel %vm860, %v874, %v694
        %v878 = vrot.slane %v715, 7
        %v879 = vrot.slane %v713, 7
        %v883 = vrot.slane %v725, 6
        %v884 = vrot.slane %v723, 6
        %v888 = vrot.slane %v735, 5
        %v889 = vrot.slane %v733, 5
        %v895 = vrot.slane %v743, 3
        %v896 = vrot.slane %v748, 3
        %v900 = vrot.slane %v758, 2
        %v901 = vrot.slane %v756, 2
        %v905 = vrot.slane %v768, 1
        %v906 = vrot.slane %v766, 1
        %v909 = vsel %vm842, %v699, %v878
        %v910 = vsel %vm842, %v705, %v879
        %v911 = vsel %vm845, %v909, %v883
        %v912 = vsel %vm845, %v910, %v884
        %v913 = vsel %vm848, %v911, %v888
        %v914 = vsel %vm848, %v912, %v889
        %v915 = vsel %vm851, %v913, %v737
        %v916 = vsel %vm851, %v914, %v738
        %v917 = vsel %vm854, %v915, %v895
        %v918 = vsel %vm854, %v916, %v896
        %v919 = vsel %vm857, %v917, %v900
        %v920 = vsel %vm857, %v918, %v901
        %v921 = vsel %vm860, %v919, %v905
        %v922 = vsel %vm860, %v920, %v906
        %v923 = vsel %vm842, %v778, 1.0
        %v924 = vsel %vm842, %v776, 1.0
        %v925 = vsel %vm845, %v923, 0.0
        %v926 = vsel %vm845, %v924, 0.0
        %v927 = vsel %vm848, %v925, 0.0
        %v928 = vsel %vm848, %v926, 0.0
        %v929 = vsel %vm851, %v927, 0.0
        %v930 = vsel %vm851, %v928, 0.0
        %v931 = vsel %vm854, %v929, 0.0
        %v932 = vsel %vm854, %v930, 0.0
        %v933 = vsel %vm857, %v931, 0.0
        %v934 = vsel %vm857, %v932, 0.0
        %v935 = vsel %vm860, %v933, 0.0
        %v936 = vsel %vm860, %v934, 0.0
        %v937 = vld [vmem:[%s5] sm:$0xff]
        %v938 = vld [vmem:[%s5 + $0x8] sm:$0xff]
        %v939 = vld [vmem:[%s5 + $0x10] sm:$0xff]
        %v940 = vld [vmem:[%s5 + $0x18] sm:$0xff]
        %v941 = vld [vmem:[%s5 + $0x20] sm:$0xff]
        %v942 = vld [vmem:[%s5 + $0x28] sm:$0xff]
        %v943 = vld [vmem:[%s5 + $0x30] sm:$0xff]
        %v944 = vld [vmem:[%s5 + $0x38] sm:$0xff]
        %v945 = vld [vmem:[%s5 + $0x40] sm:$0xff]
        %v946 = vld [vmem:[%s5 + $0x48] sm:$0xff]
        %vm947 = vcmask 261120
        %v949 = vsel %vm947, %v937, 0
        %v952 = vsel %vm947, %v938, 0
        %v955 = vsel %vm947, %v939, 0
        %v958 = vsel %vm947, %v940, 0
        %v961 = vsel %vm947, %v941, 0
        %v964 = vsel %vm947, %v942, 0
        %v967 = vsel %vm947, %v943, 0
        %v970 = vsel %vm947, %v944, 0
        %v973 = vsel %vm947, %v945, 0
        %v976 = vsel %vm947, %v946, 0
        %978 = vmatpush.msra.mxu0 0.0
        %979 = vmatpush.msra.mxu0 0.0
        %980 = vmatpush.msra.mxu0 0.0
        %981 = vmatpush.msra.mxu0 0.0
        %982 = vmatpush.msra.mxu0 0.0
        %983 = vmatpush.msra.mxu0 0.0
        %984 = vmatpush.msra.mxu0 0.0
        %985 = vmatpush.msra.mxu0 0.0
        %986 = vmatpush.msra.mxu0 0.0
        %987 = vmatpush.msra.mxu0 0.0
        %988 = vmatpush.msra.mxu0 0.0
        %989 = vmatpush.msra.mxu0 0.0
        %990 = vmatpush.msra.mxu0 %v935
        %991 = vmatpush.msra.mxu0 %v921
        %992 = vmatpush.msra.mxu0 %v875
        %993 = vmatpush.msra.mxu0 %v861
        %994 = vmatmul.f32.gmra.mxu0 %v949
        %v995 = vpop.f32.mrf.mxu0
        %v996 = vadd.f32 0.0, %v995
        %997 = vmatmul.f32.gmra.mxu0 %v952
        %v998 = vpop.f32.mrf.mxu0
        %v999 = vadd.f32 0.0, %v998
        %1000 = vmatmul.f32.gmra.mxu0 %v955
        %v1001 = vpop.f32.mrf.mxu0
        %v1002 = vadd.f32 0.0, %v1001
        %1003 = vmatmul.f32.gmra.mxu0 %v958
        %v1004 = vpop.f32.mrf.mxu0
        %v1005 = vadd.f32 0.0, %v1004
        %1006 = vmatmul.f32.gmra.mxu0 %v961
        %v1007 = vpop.f32.mrf.mxu0
        %v1008 = vadd.f32 0.0, %v1007
        %1009 = vmatmul.f32.gmra.mxu0 %v964
        %v1010 = vpop.f32.mrf.mxu0
        %v1011 = vadd.f32 0.0, %v1010
        %1012 = vmatmul.f32.gmra.mxu0 %v967
        %v1013 = vpop.f32.mrf.mxu0
        %v1014 = vadd.f32 0.0, %v1013
        %1015 = vmatmul.f32.gmra.mxu0 %v970
        %v1016 = vpop.f32.mrf.mxu0
        %v1017 = vadd.f32 0.0, %v1016
        %1018 = vmatmul.f32.gmra.mxu0 %v973
        %v1019 = vpop.f32.mrf.mxu0
        %v1020 = vadd.f32 0.0, %v1019
        %1021 = vmatmul.f32.gmra.mxu0 %v976
        %v1022 = vpop.f32.mrf.mxu0
        %v1023 = vadd.f32 0.0, %v1022
        %1024 = vdwg.mxu0
        %1025 = vmatpush.msra.mxu0 0.0
        %1026 = vmatpush.msra.mxu0 0.0
        %1027 = vmatpush.msra.mxu0 0.0
        %1028 = vmatpush.msra.mxu0 0.0
        %1029 = vmatpush.msra.mxu0 0.0
        %1030 = vmatpush.msra.mxu0 0.0
        %1031 = vmatpush.msra.mxu0 0.0
        %1032 = vmatpush.msra.mxu0 0.0
        %1033 = vmatpush.msra.mxu0 0.0
        %1034 = vmatpush.msra.mxu0 0.0
        %1035 = vmatpush.msra.mxu0 0.0
        %1036 = vmatpush.msra.mxu0 0.0
        %1037 = vmatpush.msra.mxu0 %v936
        %1038 = vmatpush.msra.mxu0 %v922
        %1039 = vmatpush.msra.mxu0 %v876
        %1040 = vmatpush.msra.mxu0 %v862
        %1041 = vmatmul.f32.gmra.mxu0 %v949
        %v1042 = vpop.f32.mrf.mxu0
        %v1043 = vadd.f32 0.0, %v1042
        %1044 = vmatmul.f32.gmra.mxu0 %v952
        %v1045 = vpop.f32.mrf.mxu0
        %v1046 = vadd.f32 0.0, %v1045
        %1047 = vmatmul.f32.gmra.mxu0 %v955
        %v1048 = vpop.f32.mrf.mxu0
        %v1049 = vadd.f32 0.0, %v1048
        %1050 = vmatmul.f32.gmra.mxu0 %v958
        %v1051 = vpop.f32.mrf.mxu0
        %v1052 = vadd.f32 0.0, %v1051
        %1053 = vmatmul.f32.gmra.mxu0 %v961
        %v1054 = vpop.f32.mrf.mxu0
        %v1055 = vadd.f32 0.0, %v1054
        %1056 = vmatmul.f32.gmra.mxu0 %v964
        %v1057 = vpop.f32.mrf.mxu0
        %v1058 = vadd.f32 0.0, %v1057
        %1059 = vmatmul.f32.gmra.mxu0 %v967
        %v1060 = vpop.f32.mrf.mxu0
        %v1061 = vadd.f32 0.0, %v1060
        %1062 = vmatmul.f32.gmra.mxu0 %v970
        %v1063 = vpop.f32.mrf.mxu0
        %v1064 = vadd.f32 0.0, %v1063
        %1065 = vmatmul.f32.gmra.mxu0 %v973
        %v1066 = vpop.f32.mrf.mxu0
        %v1067 = vadd.f32 0.0, %v1066
        %1068 = vmatmul.f32.gmra.mxu0 %v976
        %v1069 = vpop.f32.mrf.mxu0
        %v1070 = vadd.f32 0.0, %v1069
        %1071 = vdwg.mxu0
        %1076 = vrot.lane.b32.xlu0 %v1002, 127
        %v1077 = vpop.permute.xlu0 %1076
        %1078 = vrot.lane.b32.xlu0 %v1049, 127
        %v1079 = vpop.permute.xlu0 %1078
        %1080 = vrot.lane.b32.xlu0 %v1005, 127
        %v1081 = vpop.permute.xlu0 %1080
        %1082 = vrot.lane.b32.xlu0 %v1052, 127
        %v1083 = vpop.permute.xlu0 %1082
        %vm1084 = vcmask 1039360
        %v1085 = vsel %vm1084, %v1077, %v1079
        %v1086 = vsel %vm1084, %v1081, %v1083
        %1091 = vrot.lane.b32.xlu0 %v1002, 15
        %v1092 = vpop.permute.xlu0 %1091
        %1093 = vrot.lane.b32.xlu0 %v1005, 15
        %v1094 = vpop.permute.xlu0 %1093
        %vm1097 = vcmask 121856
        %v1098 = vsel %vm1097, %v1079, %v1092
        %v1099 = vsel %vm1097, %v1083, %v1094
        %v1100 = vadd.f32 %v996, %v1085
        %v1101 = vadd.f32 %v1043, %v1098
        %v1102 = vadd.f32 %v999, %v1086
        %v1103 = vadd.f32 %v1046, %v1099
        %1108 = vrot.lane.b32.xlu0 %v1008, 126
        %v1109 = vpop.permute.xlu0 %1108
        %1110 = vrot.lane.b32.xlu0 %v1055, 126
        %v1111 = vpop.permute.xlu0 %1110
        %1112 = vrot.lane.b32.xlu0 %v1011, 126
        %v1113 = vpop.permute.xlu0 %1112
        %1114 = vrot.lane.b32.xlu0 %v1058, 126
        %v1115 = vpop.permute.xlu0 %1114
        %vm1116 = vcmask 1031168
        %v1117 = vsel %vm1116, %v1109, %v1111
        %v1118 = vsel %vm1116, %v1113, %v1115
        %1123 = vrot.lane.b32.xlu0 %v1008, 14
        %v1124 = vpop.permute.xlu0 %1123
        %1125 = vrot.lane.b32.xlu0 %v1011, 14
        %v1126 = vpop.permute.xlu0 %1125
        %vm1129 = vcmask 113664
        %v1130 = vsel %vm1129, %v1111, %v1124
        %v1131 = vsel %vm1129, %v1115, %v1126
        %v1132 = vadd.f32 %v1100, %v1117
        %v1133 = vadd.f32 %v1101, %v1130
        %v1134 = vadd.f32 %v1102, %v1118
        %v1135 = vadd.f32 %v1103, %v1131
        %1140 = vrot.lane.b32.xlu0 %v1014, 125
        %v1141 = vpop.permute.xlu0 %1140
        %1142 = vrot.lane.b32.xlu0 %v1061, 125
        %v1143 = vpop.permute.xlu0 %1142
        %1144 = vrot.lane.b32.xlu0 %v1017, 125
        %v1145 = vpop.permute.xlu0 %1144
        %1146 = vrot.lane.b32.xlu0 %v1064, 125
        %v1147 = vpop.permute.xlu0 %1146
        %vm1148 = vcmask 1022976
        %v1149 = vsel %vm1148, %v1141, %v1143
        %v1150 = vsel %vm1148, %v1145, %v1147
        %1155 = vrot.lane.b32.xlu0 %v1014, 13
        %v1156 = vpop.permute.xlu0 %1155
        %1157 = vrot.lane.b32.xlu0 %v1017, 13
        %v1158 = vpop.permute.xlu0 %1157
        %vm1161 = vcmask 105472
        %v1162 = vsel %vm1161, %v1143, %v1156
        %v1163 = vsel %vm1161, %v1147, %v1158
        %v1164 = vadd.f32 %v1132, %v1149
        %v1165 = vadd.f32 %v1133, %v1162
        %v1166 = vadd.f32 %v1134, %v1150
        %v1167 = vadd.f32 %v1135, %v1163
        %1172 = vrot.lane.b32.xlu0 %v1020, 124
        %v1173 = vpop.permute.xlu0 %1172
        %1174 = vrot.lane.b32.xlu0 %v1067, 124
        %v1175 = vpop.permute.xlu0 %1174
        %1176 = vrot.lane.b32.xlu0 %v1023, 124
        %v1177 = vpop.permute.xlu0 %1176
        %1178 = vrot.lane.b32.xlu0 %v1070, 124
        %v1179 = vpop.permute.xlu0 %1178
        %vm1180 = vcmask 1014784
        %v1181 = vsel %vm1180, %v1173, %v1175
        %v1182 = vsel %vm1180, %v1177, %v1179
        %1187 = vrot.lane.b32.xlu0 %v1020, 12
        %v1188 = vpop.permute.xlu0 %1187
        %1189 = vrot.lane.b32.xlu0 %v1023, 12
        %v1190 = vpop.permute.xlu0 %1189
        %vm1193 = vcmask 97280
        %v1194 = vsel %vm1193, %v1175, %v1188
        %v1195 = vsel %vm1193, %v1179, %v1190
        %v1196 = vadd.f32 %v1164, %v1181
        %v1197 = vadd.f32 %v1165, %v1194
        %v1198 = vadd.f32 %v1166, %v1182
        %v1199 = vadd.f32 %v1167, %v1195
        %v1200 = vld [vmem:[%s6] sm:$0x3]
        %v1202 = vperm.slane %v1200, 0
        %v1203 = vperm.slane %v1200, 1
        %v1206 = vmul.f32 %v1196, %v1202
        %v1207 = vmul.f32 %v1197, %v1203
        %v1208 = vmul.f32 %v1198, %v1202
        %v1209 = vmul.f32 %v1199, %v1203
        %vm1210 = vcmask 130048
        %v1211 = vsel %vm1210, %v1207, 0.0
        %v1212 = vadd.f32 %v1206, %v1211
        %1213 = vadd.xlane.f32.xlu0 %v1212
        %v1214 = vpop.xlane.xlu0 %1213
        %v1215 = vsel %vm1210, %v1209, 0.0
        %v1216 = vadd.f32 %v1208, %v1215
        %1217 = vadd.xlane.f32.xlu0 %v1216
        %v1218 = vpop.xlane.xlu0 %1217
        %v1219 = vmul.f32 %v1214, 0.015625
        %v1220 = vmul.f32 %v1218, 0.015625
        %v1221 = vsub.f32 %v1196, %v1219
        %v1222 = vsub.f32 %v1197, %v1219
        %v1223 = vsub.f32 %v1198, %v1220
        %v1224 = vsub.f32 %v1199, %v1220
        %v1225 = vmul.f32 %v1221, %v1202
        %v1226 = vmul.f32 %v1222, %v1203
        %v1227 = vmul.f32 %v1223, %v1202
        %v1228 = vmul.f32 %v1224, %v1203
        %v1229 = vmul.f32 %v1225, %v1225
        %v1230 = vmul.f32 %v1226, %v1226
        %v1231 = vmul.f32 %v1227, %v1227
        %v1232 = vmul.f32 %v1228, %v1228
        %v1233 = vsel %vm1210, %v1230, 0.0
        %v1234 = vadd.f32 %v1229, %v1233
        %1235 = vadd.xlane.f32.xlu0 %v1234
        %v1236 = vpop.xlane.xlu0 %1235
        %v1237 = vsel %vm1210, %v1232, 0.0
        %v1238 = vadd.f32 %v1231, %v1237
        %1239 = vadd.xlane.f32.xlu0 %v1238
        %v1240 = vpop.xlane.xlu0 %1239
        %vm1241 = vcmask 7168
        %1242 = vst.msk [vmem:[%s540] sm:$0xff] %vm1241, %v1214
        %1243 = vst.msk [vmem:[%s540 + $0x8] sm:$0xff] %vm1241, %v1218
        %1244 = vst.msk [vmem:[%s549] sm:$0xff] %vm1241, %v1236
        %1245 = vst.msk [vmem:[%s549 + $0x8] sm:$0xff] %vm1241, %v1240
        %p1246 = scmp.lt.s32.totalorder %s30, 1
        %s1247 = scalar_select %p1246, %s30, 1
        %p1248 = scmp.lt.s32.totalorder %s31, 7
        %s1249 = scalar_select %p1248, %s31, 7
        %s1250 = smul.addr %s1249, 2
        %s1251 = smul.addr %s1247, 16
        %s1252 = sadd.s32 %s1250, %s1251
        %s1253 = smul.addr %s1252, 8
        %s1254 = scalar_lea.vmem %s7, %s1253
        %p1255 = scmp.lt.s32.totalorder %s30, 1
        %s1256 = scalar_select %p1255, %s30, 1
        %p1257 = scmp.lt.s32.totalorder %s31, 7
        %s1258 = scalar_select %p1257, %s31, 7
        %s1259 = smul.addr %s1258, 2
        %s1260 = smul.addr %s1256, 16
        %s1261 = sadd.s32 %s1259, %s1260
        %s1262 = smul.addr %s1261, 8
        %s1263 = scalar_lea.vmem %s8, %s1262
        // Predicated region
        $region61: #{tpu_custom_call.1} parent=47 // pred_check
          %p1264 = pneg %p258
        $region62: #{tpu_custom_call.1} parent=47 // pred_check_branch
          %1266 = sbr.rel (%p1264) target = $region64
        $region63: #{tpu_custom_call.1} parent=47 // pred_region
          _
        $region64: #{tpu_custom_call.1} parent=47 // pred_fallthru
          _
        // Predicated region
        $region65: #{tpu_custom_call.1} parent=47 // pred_check
          %p1267 = pneg %p286
        $region66: #{tpu_custom_call.1} parent=47 // pred_check_branch
          %1269 = sbr.rel (%p1267) target = $region68
        $region67: #{tpu_custom_call.1} parent=47 // pred_region
          _
        $region68: #{tpu_custom_call.1} parent=47 // pred_fallthru
          _
      $region48: #{tpu_custom_call.1} parent=5 // pred_fallthru
        _
      %p1270 = scmp.le.s32.totalorder 2, %s21
      // Predicated region
      $region69: #{tpu_custom_call.1} parent=5 // pred_check
        %p1271 = pneg %p1270
      $region70: #{tpu_custom_call.1} parent=5 // pred_check_branch
        %1273 = sbr.rel (%p1271) target = $region72
      $region71: #{tpu_custom_call.1} parent=5 // pred_region
        %s1274 = ssub.s32 %s21, 2
        // Predicated region
        $region73: #{tpu_custom_call.1} parent=71 // pred_check
          %p1275 = pneg %p264
        $region74: #{tpu_custom_call.1} parent=71 // pred_check_branch
          %1277 = sbr.rel (%p1275) target = $region76
        $region75: #{tpu_custom_call.1} parent=71 // pred_region
          %p1278 = scmp.lt.s32.totalorder %s32, 1
          %s1279 = scalar_select %p1278, %s32, 1
          %p1280 = scmp.lt.s32.totalorder %s33, 7
          %s1281 = scalar_select %p1280, %s33, 7
          %s1282 = smul.addr %s1281, 2
          %s1283 = smul.addr %s1279, 16
          %s1284 = sadd.s32 %s1282, %s1283
          %s1285 = smul.addr %s1284, 8
          %s1286 = scalar_lea.vmem %s7, %s1285
        $region76: #{tpu_custom_call.1} parent=71 // pred_fallthru
          _
        // Predicated region
        $region77: #{tpu_custom_call.1} parent=71 // pred_check
          %p1287 = pneg %p292
        $region78: #{tpu_custom_call.1} parent=71 // pred_check_branch
          %1289 = sbr.rel (%p1287) target = $region80
        $region79: #{tpu_custom_call.1} parent=71 // pred_region
          %p1290 = scmp.lt.s32.totalorder %s32, 1
          %s1291 = scalar_select %p1290, %s32, 1
          %p1292 = scmp.lt.s32.totalorder %s33, 7
          %s1293 = scalar_select %p1292, %s33, 7
          %s1294 = smul.addr %s1293, 2
          %s1295 = smul.addr %s1291, 16
          %s1296 = sadd.s32 %s1294, %s1295
          %s1297 = smul.addr %s1296, 8
          %s1298 = scalar_lea.vmem %s8, %s1297
        $region80: #{tpu_custom_call.1} parent=71 // pred_fallthru
          _
      $region72: #{tpu_custom_call.1} parent=5 // pred_fallthru
        _
    $region6: #{tpu_custom_call.1} parent=1 // loop_footer
      %s25 = sadd.s32 1, %s21
    $region7: #{tpu_custom_call.1} parent=1 // loop_footer_branch
      %20 = sbr.rel target = $region3
    $region8: #{tpu_custom_call.1} parent=1 // loop_exit
      _
    %1299 = vsyncpa [#allocation3], 1
    %s1300 = scalar_lea.sflag [#allocation3], 1
    %1301 = vsyncpa %s1300, 1
    %1302 = vsyncpa [#allocation5], 1
    %s1303 = scalar_lea.sflag [#allocation5], 1
    %1304 = vsyncpa %s1303, 1

</llo_original>
